<compile_context>
chip_gen: v5e
topology: v5e:2x2
jax: 0.10.0
libtpu: 0.0.40
codegen_flags: <defaults>
</compile_context>

<pallas_src>
import functools

import jax
import jax.numpy as jnp
from jax.experimental import pallas as pl
from jax.experimental.pallas import tpu as pltpu

# Hard-coded in the torch forward().
_STD = (0.229, 0.224, 0.225)
_MEAN = (0.485, 0.456, 0.406)
_INV_STD = tuple(1.0 / s for s in _STD)
_IN_CH = 3


# ----------------------------------------------------------------------------
# Fused kernel
# ----------------------------------------------------------------------------
def _fused_kernel(*refs, n_pairs, num_class, ignore_label):
    """Process one (batch_n, hw_tile) block.

    refs = [x_ref, lab_ref,
            (w_seg, b_seg, w_den, b_den) * n_pairs, w_train, b_train,   # SMEM
            out_ref, part_ref]
    x_ref   : VMEM (1, 3, T)          f32   (normalized inputs, channel-major)
    lab_ref : VMEM (1, 1, T)          i32
    out_ref : VMEM (1, num_class, T)  f32   (train-model logits = seg_prob)
    part_ref: VMEM (1, 1, 2, 128)     f32   (row0 = loss_sum, row1 = valid cnt)
    """
    x_ref, lab_ref = refs[0], refs[1]
    w_refs = refs[2:-2]
    out_ref, part_ref = refs[-2], refs[-1]

    T = x_ref.shape[-1]
    f32 = jnp.float32

    def conv_rows(rows, w_ref, b_ref, cout):
        # rows: list of (1, T) f32; w_ref: SMEM (len(rows), cout); b_ref: SMEM (cout,)
        # Unrolled VPU FMAs (K and N are 3..7, far too small for the MXU).
        out = []
        for o in range(cout):
            acc = jnp.full((1, T), b_ref[o], f32)
            for ci in range(len(rows)):
                acc = acc + w_ref[ci, o] * rows[ci]
            out.append(acc)
        return out

    # Channel-major rows of the current "inputs".
    cur = [x_ref[0, c:c + 1, :].astype(f32) for c in range(_IN_CH)]
    # noisy_image = inputs * std + mean
    noisy = [cur[c] * _STD[c] + _MEAN[c] for c in range(_IN_CH)]
    # denoise_image = 0
    den = [jnp.zeros((1, T), f32) for _ in range(_IN_CH)]

    for i in range(n_pairs):
        w_seg, b_seg, w_den, b_den = w_refs[4 * i:4 * i + 4]
        # seg model (model_{2i+1}); F.upsample to (H, W) is the identity for
        # the synthetic 1x1-conv sub-model (spatial size already preserved).
        seg = conv_rows(cur, w_seg, b_seg, num_class)
        # denoise_in = denoise_image + noisy_image
        den_in = [den[c] + noisy[c] for c in range(_IN_CH)]
        # torch.cat((denoise_in, seg_prob), 1) followed by the denoise model;
        # the per-2-sample batch split in torch is a no-op for a 1x1 conv.
        den = conv_rows(den_in + seg, w_den, b_den, _IN_CH)
        # inputs = (denoise_image - mean) / std
        cur = [(den[c] - _MEAN[c]) * _INV_STD[c] for c in range(_IN_CH)]

    # model_train
    w_train, b_train = w_refs[4 * n_pairs], w_refs[4 * n_pairs + 1]
    logits = conv_rows(cur, w_train, b_train, num_class)   # list of (1, T)

    # Write seg_prob (lane-dense, full-width stores along the HW axis).
    for c in range(num_class):
        out_ref[0, c:c + 1, :] = logits[c].astype(out_ref.dtype)

    # Cross-entropy partial sums (unrolled over num_class; no XLU reduce
    # across the tiny class axis).
    lab = lab_ref[0]                                        # (1, T) int32
    m = logits[0]
    for c in range(1, num_class):
        m = jnp.maximum(m, logits[c])
    s = jnp.zeros((1, T), f32)
    picked = jnp.zeros((1, T), f32)
    for c in range(num_class):
        s = s + jnp.exp(logits[c] - m)
        picked = picked + jnp.where(lab == c, logits[c], 0.0)
    lse = m + jnp.log(s)
    valid = (lab != ignore_label).astype(f32)
    per_px = (lse - picked) * valid
    loss_sum = jnp.sum(per_px)
    cnt = jnp.sum(valid)

    row_id = jax.lax.broadcasted_iota(jnp.int32, (2, 128), 0)
    vals = jnp.where(row_id == 0, loss_sum, cnt)            # (2, 128)
    part_ref[...] = vals[None, None, :, :]


# ----------------------------------------------------------------------------
# FullModel forward (iou=False path)
# ----------------------------------------------------------------------------
def _pick_tile(hw):
    """Largest power-of-two multiple of 128 that divides hw (<= 2048); else hw."""
    if hw % 128 == 0:
        t = 2048
        while t >= 128:
            if hw % t == 0:
                return t
            t //= 2
    return hw


def full_model_forward(params, inputs_nchw, labels, *, stages, num_class,
                       ignore_label):
    N, C, H, W = inputs_nchw.shape
    assert C == _IN_CH
    HW = H * W
    n_pairs = stages // 2

    tile_hw = _pick_tile(HW)
    n_tiles = HW // tile_hw

    # Free reshapes only (no transposes): channels stay where NCHW puts them.
    x3 = inputs_nchw.reshape(N, C, HW)
    lab3 = labels.reshape(N, 1, HW).astype(jnp.int32)

    weight_args = []
    for i in range(n_pairs):
        weight_args += [params["w_seg"][i], params["b_seg"][i],
                        params["w_den"][i], params["b_den"][i]]
    weight_args += [params["w_train"], params["b_train"]]
    smem_spec = pl.BlockSpec(memory_space=pltpu.MemorySpace.SMEM)

    kernel = functools.partial(_fused_kernel, n_pairs=n_pairs,
                               num_class=num_class, ignore_label=ignore_label)

    logits3, partials = pl.pallas_call(
        kernel,
        grid=(N, n_tiles),
        in_specs=[
            pl.BlockSpec((1, C, tile_hw), lambda n, t: (n, 0, t)),
            pl.BlockSpec((1, 1, tile_hw), lambda n, t: (n, 0, t)),
        ] + [smem_spec] * len(weight_args),
        out_specs=(
            pl.BlockSpec((1, num_class, tile_hw), lambda n, t: (n, 0, t)),
            pl.BlockSpec((1, 1, 2, 128), lambda n, t: (n, t, 0, 0)),
        ),
        out_shape=(
            jax.ShapeDtypeStruct((N, num_class, HW), jnp.float32),
            jax.ShapeDtypeStruct((N, n_tiles, 2, 128), jnp.float32),
        ),
        compiler_params=pltpu.CompilerParams(
            dimension_semantics=("parallel", "parallel"),
            vmem_limit_bytes=32 * 1024 * 1024,
        ),
    )(x3, lab3, *weight_args)

    # Final CE reduction over per-tile partials (tiny).
    loss_sum = jnp.sum(partials[:, :, 0, 0])
    cnt = jnp.sum(partials[:, :, 1, 0])
    # Note: torch CrossEntropyLoss yields NaN with zero valid pixels; we
    # return 0 in that degenerate case (max(count, 1)).
    loss = loss_sum / jnp.maximum(cnt, 1.0)

    seg_prob = logits3.reshape(N, num_class, H, W)   # free reshape, NCHW
    return loss[None], seg_prob                      # (loss.unsqueeze(0), seg_prob)


# ----------------------------------------------------------------------------
# Deterministic parameter init (synthetic 1x1-conv sub-models)
# ----------------------------------------------------------------------------
def init_params(key, stages, num_class, in_ch=_IN_CH):
    n_pairs = stages // 2
    keys = jax.random.split(key, 4 * n_pairs + 2)
    params = {"w_seg": [], "b_seg": [], "w_den": [], "b_den": []}
    k = 0
    for _ in range(n_pairs):
        params["w_seg"].append(
            0.1 * jax.random.normal(keys[k], (in_ch, num_class), jnp.float32)); k += 1
        params["b_seg"].append(
            0.01 * jax.random.normal(keys[k], (num_class,), jnp.float32)); k += 1
        params["w_den"].append(
            0.1 * jax.random.normal(keys[k], (in_ch + num_class, in_ch), jnp.float32)); k += 1
        params["b_den"].append(
            0.01 * jax.random.normal(keys[k], (in_ch,), jnp.float32)); k += 1
    params["w_train"] = 0.1 * jax.random.normal(keys[k], (in_ch, num_class), jnp.float32); k += 1
    params["b_train"] = 0.01 * jax.random.normal(keys[k], (num_class,), jnp.float32)
    return params


# ----------------------------------------------------------------------------
if __name__ == "__main__":
    N, C, H, W = 2, 3, 16, 16
    num_class = 4
    stages = 2
    ignore_label = -1

    key = jax.random.PRNGKey(0)
    k_in, k_lab, k_par = jax.random.split(key, 3)

    inputs = jax.random.normal(k_in, (N, C, H, W), jnp.float32)
    # labels in {-1 (ignored), 0..num_class-1}
    labels = jax.random.randint(k_lab, (N, H, W), -1, num_class)
    params = init_params(k_par, stages, num_class)

    fwd = functools.partial(full_model_forward, stages=stages,
                            num_class=num_class, ignore_label=ignore_label)
    loss, seg_prob = fwd(params, inputs, labels)
    jax.block_until_ready((loss, seg_prob))

    assert loss.shape == (1,)
    assert seg_prob.shape == (N, num_class, H, W)
    assert bool(jnp.isfinite(loss).all())
    assert bool(jnp.isfinite(seg_prob).all())
    print("KERNEL_OK")
</pallas_src>

<mosaic_0001>
module attributes {stable_mosaic.version = 11 : i64} {
  func.func @_fused_kernel(%arg0: i32, %arg1: i32, %arg2: memref<1x3x256xf32, #tpu.memory_space<vmem>>, %arg3: memref<1x1x256xi32, #tpu.memory_space<vmem>>, %arg4: memref<3x4xf32, #tpu.memory_space<smem>>, %arg5: memref<4xf32, #tpu.memory_space<smem>>, %arg6: memref<7x3xf32, #tpu.memory_space<smem>>, %arg7: memref<3xf32, #tpu.memory_space<smem>>, %arg8: memref<3x4xf32, #tpu.memory_space<smem>>, %arg9: memref<4xf32, #tpu.memory_space<smem>>, %arg10: memref<1x4x256xf32, #tpu.memory_space<vmem>>, %arg11: memref<1x1x2x128xf32, #tpu.memory_space<vmem>>) attributes {dimension_semantics = [#tpu.dimension_semantics<parallel>, #tpu.dimension_semantics<parallel>], iteration_bounds = array<i64: 2, 1>, scalar_prefetch = 0 : i64, scratch_operands = 0 : i64, tpu.core_type = #tpu.core_type<tc>, window_params = [{transform_indices = @transform_0, window_bounds = array<i64: 1, 3, 256>}, {transform_indices = @transform_1, window_bounds = array<i64: 1, 1, 256>}, {transform_indices = @transform_2, window_bounds = array<i64: 3, 4>}, {transform_indices = @transform_3, window_bounds = array<i64: 4>}, {transform_indices = @transform_4, window_bounds = array<i64: 7, 3>}, {transform_indices = @transform_5, window_bounds = array<i64: 3>}, {transform_indices = @transform_6, window_bounds = array<i64: 3, 4>}, {transform_indices = @transform_7, window_bounds = array<i64: 4>}, {transform_indices = @transform_8, window_bounds = array<i64: 1, 4, 256>}, {transform_indices = @transform_9, window_bounds = array<i64: 1, 1, 2, 128>}]} {
    %c0 = arith.constant 0 : index
    %c0_0 = arith.constant 0 : index
    %c0_1 = arith.constant 0 : index
    %0 = vector.load %arg2[%c0, %c0_0, %c0_1] : memref<1x3x256xf32, #tpu.memory_space<vmem>>, vector<1x1x256xf32>
    %1 = vector.shape_cast %0 : vector<1x1x256xf32> to vector<1x256xf32>
    %c0_2 = arith.constant 0 : index
    %c1 = arith.constant 1 : index
    %c0_3 = arith.constant 0 : index
    %2 = vector.load %arg2[%c0_2, %c1, %c0_3] : memref<1x3x256xf32, #tpu.memory_space<vmem>>, vector<1x1x256xf32>
    %3 = vector.shape_cast %2 : vector<1x1x256xf32> to vector<1x256xf32>
    %c0_4 = arith.constant 0 : index
    %c2 = arith.constant 2 : index
    %c0_5 = arith.constant 0 : index
    %4 = vector.load %arg2[%c0_4, %c2, %c0_5] : memref<1x3x256xf32, #tpu.memory_space<vmem>>, vector<1x1x256xf32>
    %5 = vector.shape_cast %4 : vector<1x1x256xf32> to vector<1x256xf32>
    %cst = arith.constant 2.290000e-01 : f32
    %6 = vector.broadcast %cst : f32 to vector<1x256xf32>
    %7 = arith.mulf %1, %6 : vector<1x256xf32>
    %cst_6 = arith.constant 4.850000e-01 : f32
    %8 = vector.broadcast %cst_6 : f32 to vector<1x256xf32>
    %9 = arith.addf %7, %8 : vector<1x256xf32>
    %cst_7 = arith.constant 2.240000e-01 : f32
    %10 = vector.broadcast %cst_7 : f32 to vector<1x256xf32>
    %11 = arith.mulf %3, %10 : vector<1x256xf32>
    %cst_8 = arith.constant 4.560000e-01 : f32
    %12 = vector.broadcast %cst_8 : f32 to vector<1x256xf32>
    %13 = arith.addf %11, %12 : vector<1x256xf32>
    %cst_9 = arith.constant 2.250000e-01 : f32
    %14 = vector.broadcast %cst_9 : f32 to vector<1x256xf32>
    %15 = arith.mulf %5, %14 : vector<1x256xf32>
    %cst_10 = arith.constant 4.060000e-01 : f32
    %16 = vector.broadcast %cst_10 : f32 to vector<1x256xf32>
    %17 = arith.addf %15, %16 : vector<1x256xf32>
    %cst_11 = arith.constant 0.000000e+00 : f32
    %18 = vector.broadcast %cst_11 : f32 to vector<1x256xf32>
    %cst_12 = arith.constant 0.000000e+00 : f32
    %19 = vector.broadcast %cst_12 : f32 to vector<1x256xf32>
    %cst_13 = arith.constant 0.000000e+00 : f32
    %20 = vector.broadcast %cst_13 : f32 to vector<1x256xf32>
    %c0_14 = arith.constant 0 : index
    %21 = memref.load %arg5[%c0_14] : memref<4xf32, #tpu.memory_space<smem>>
    %22 = vector.broadcast %21 : f32 to vector<1x256xf32>
    %c0_15 = arith.constant 0 : index
    %c0_16 = arith.constant 0 : index
    %23 = memref.load %arg4[%c0_15, %c0_16] : memref<3x4xf32, #tpu.memory_space<smem>>
    %24 = vector.broadcast %23 : f32 to vector<1x256xf32>
    %25 = arith.mulf %24, %1 : vector<1x256xf32>
    %26 = arith.addf %22, %25 : vector<1x256xf32>
    %c1_17 = arith.constant 1 : index
    %c0_18 = arith.constant 0 : index
    %27 = memref.load %arg4[%c1_17, %c0_18] : memref<3x4xf32, #tpu.memory_space<smem>>
    %28 = vector.broadcast %27 : f32 to vector<1x256xf32>
    %29 = arith.mulf %28, %3 : vector<1x256xf32>
    %30 = arith.addf %26, %29 : vector<1x256xf32>
    %c2_19 = arith.constant 2 : index
    %c0_20 = arith.constant 0 : index
    %31 = memref.load %arg4[%c2_19, %c0_20] : memref<3x4xf32, #tpu.memory_space<smem>>
    %32 = vector.broadcast %31 : f32 to vector<1x256xf32>
    %33 = arith.mulf %32, %5 : vector<1x256xf32>
    %34 = arith.addf %30, %33 : vector<1x256xf32>
    %c1_21 = arith.constant 1 : index
    %35 = memref.load %arg5[%c1_21] : memref<4xf32, #tpu.memory_space<smem>>
    %36 = vector.broadcast %35 : f32 to vector<1x256xf32>
    %c0_22 = arith.constant 0 : index
    %c1_23 = arith.constant 1 : index
    %37 = memref.load %arg4[%c0_22, %c1_23] : memref<3x4xf32, #tpu.memory_space<smem>>
    %38 = vector.broadcast %37 : f32 to vector<1x256xf32>
    %39 = arith.mulf %38, %1 : vector<1x256xf32>
    %40 = arith.addf %36, %39 : vector<1x256xf32>
    %c1_24 = arith.constant 1 : index
    %c1_25 = arith.constant 1 : index
    %41 = memref.load %arg4[%c1_24, %c1_25] : memref<3x4xf32, #tpu.memory_space<smem>>
    %42 = vector.broadcast %41 : f32 to vector<1x256xf32>
    %43 = arith.mulf %42, %3 : vector<1x256xf32>
    %44 = arith.addf %40, %43 : vector<1x256xf32>
    %c2_26 = arith.constant 2 : index
    %c1_27 = arith.constant 1 : index
    %45 = memref.load %arg4[%c2_26, %c1_27] : memref<3x4xf32, #tpu.memory_space<smem>>
    %46 = vector.broadcast %45 : f32 to vector<1x256xf32>
    %47 = arith.mulf %46, %5 : vector<1x256xf32>
    %48 = arith.addf %44, %47 : vector<1x256xf32>
    %c2_28 = arith.constant 2 : index
    %49 = memref.load %arg5[%c2_28] : memref<4xf32, #tpu.memory_space<smem>>
    %50 = vector.broadcast %49 : f32 to vector<1x256xf32>
    %c0_29 = arith.constant 0 : index
    %c2_30 = arith.constant 2 : index
    %51 = memref.load %arg4[%c0_29, %c2_30] : memref<3x4xf32, #tpu.memory_space<smem>>
    %52 = vector.broadcast %51 : f32 to vector<1x256xf32>
    %53 = arith.mulf %52, %1 : vector<1x256xf32>
    %54 = arith.addf %50, %53 : vector<1x256xf32>
    %c1_31 = arith.constant 1 : index
    %c2_32 = arith.constant 2 : index
    %55 = memref.load %arg4[%c1_31, %c2_32] : memref<3x4xf32, #tpu.memory_space<smem>>
    %56 = vector.broadcast %55 : f32 to vector<1x256xf32>
    %57 = arith.mulf %56, %3 : vector<1x256xf32>
    %58 = arith.addf %54, %57 : vector<1x256xf32>
    %c2_33 = arith.constant 2 : index
    %c2_34 = arith.constant 2 : index
    %59 = memref.load %arg4[%c2_33, %c2_34] : memref<3x4xf32, #tpu.memory_space<smem>>
    %60 = vector.broadcast %59 : f32 to vector<1x256xf32>
    %61 = arith.mulf %60, %5 : vector<1x256xf32>
    %62 = arith.addf %58, %61 : vector<1x256xf32>
    %c3 = arith.constant 3 : index
    %63 = memref.load %arg5[%c3] : memref<4xf32, #tpu.memory_space<smem>>
    %64 = vector.broadcast %63 : f32 to vector<1x256xf32>
    %c0_35 = arith.constant 0 : index
    %c3_36 = arith.constant 3 : index
    %65 = memref.load %arg4[%c0_35, %c3_36] : memref<3x4xf32, #tpu.memory_space<smem>>
    %66 = vector.broadcast %65 : f32 to vector<1x256xf32>
    %67 = arith.mulf %66, %1 : vector<1x256xf32>
    %68 = arith.addf %64, %67 : vector<1x256xf32>
    %c1_37 = arith.constant 1 : index
    %c3_38 = arith.constant 3 : index
    %69 = memref.load %arg4[%c1_37, %c3_38] : memref<3x4xf32, #tpu.memory_space<smem>>
    %70 = vector.broadcast %69 : f32 to vector<1x256xf32>
    %71 = arith.mulf %70, %3 : vector<1x256xf32>
    %72 = arith.addf %68, %71 : vector<1x256xf32>
    %c2_39 = arith.constant 2 : index
    %c3_40 = arith.constant 3 : index
    %73 = memref.load %arg4[%c2_39, %c3_40] : memref<3x4xf32, #tpu.memory_space<smem>>
    %74 = vector.broadcast %73 : f32 to vector<1x256xf32>
    %75 = arith.mulf %74, %5 : vector<1x256xf32>
    %76 = arith.addf %72, %75 : vector<1x256xf32>
    %77 = arith.addf %18, %9 : vector<1x256xf32>
    %78 = arith.addf %19, %13 : vector<1x256xf32>
    %79 = arith.addf %20, %17 : vector<1x256xf32>
    %c0_41 = arith.constant 0 : index
    %80 = memref.load %arg7[%c0_41] : memref<3xf32, #tpu.memory_space<smem>>
    %81 = vector.broadcast %80 : f32 to vector<1x256xf32>
    %c0_42 = arith.constant 0 : index
    %c0_43 = arith.constant 0 : index
    %82 = memref.load %arg6[%c0_42, %c0_43] : memref<7x3xf32, #tpu.memory_space<smem>>
    %83 = vector.broadcast %82 : f32 to vector<1x256xf32>
    %84 = arith.mulf %83, %77 : vector<1x256xf32>
    %85 = arith.addf %81, %84 : vector<1x256xf32>
    %c1_44 = arith.constant 1 : index
    %c0_45 = arith.constant 0 : index
    %86 = memref.load %arg6[%c1_44, %c0_45] : memref<7x3xf32, #tpu.memory_space<smem>>
    %87 = vector.broadcast %86 : f32 to vector<1x256xf32>
    %88 = arith.mulf %87, %78 : vector<1x256xf32>
    %89 = arith.addf %85, %88 : vector<1x256xf32>
    %c2_46 = arith.constant 2 : index
    %c0_47 = arith.constant 0 : index
    %90 = memref.load %arg6[%c2_46, %c0_47] : memref<7x3xf32, #tpu.memory_space<smem>>
    %91 = vector.broadcast %90 : f32 to vector<1x256xf32>
    %92 = arith.mulf %91, %79 : vector<1x256xf32>
    %93 = arith.addf %89, %92 : vector<1x256xf32>
    %c3_48 = arith.constant 3 : index
    %c0_49 = arith.constant 0 : index
    %94 = memref.load %arg6[%c3_48, %c0_49] : memref<7x3xf32, #tpu.memory_space<smem>>
    %95 = vector.broadcast %94 : f32 to vector<1x256xf32>
    %96 = arith.mulf %95, %34 : vector<1x256xf32>
    %97 = arith.addf %93, %96 : vector<1x256xf32>
    %c4 = arith.constant 4 : index
    %c0_50 = arith.constant 0 : index
    %98 = memref.load %arg6[%c4, %c0_50] : memref<7x3xf32, #tpu.memory_space<smem>>
    %99 = vector.broadcast %98 : f32 to vector<1x256xf32>
    %100 = arith.mulf %99, %48 : vector<1x256xf32>
    %101 = arith.addf %97, %100 : vector<1x256xf32>
    %c5 = arith.constant 5 : index
    %c0_51 = arith.constant 0 : index
    %102 = memref.load %arg6[%c5, %c0_51] : memref<7x3xf32, #tpu.memory_space<smem>>
    %103 = vector.broadcast %102 : f32 to vector<1x256xf32>
    %104 = arith.mulf %103, %62 : vector<1x256xf32>
    %105 = arith.addf %101, %104 : vector<1x256xf32>
    %c6 = arith.constant 6 : index
    %c0_52 = arith.constant 0 : index
    %106 = memref.load %arg6[%c6, %c0_52] : memref<7x3xf32, #tpu.memory_space<smem>>
    %107 = vector.broadcast %106 : f32 to vector<1x256xf32>
    %108 = arith.mulf %107, %76 : vector<1x256xf32>
    %109 = arith.addf %105, %108 : vector<1x256xf32>
    %c1_53 = arith.constant 1 : index
    %110 = memref.load %arg7[%c1_53] : memref<3xf32, #tpu.memory_space<smem>>
    %111 = vector.broadcast %110 : f32 to vector<1x256xf32>
    %c0_54 = arith.constant 0 : index
    %c1_55 = arith.constant 1 : index
    %112 = memref.load %arg6[%c0_54, %c1_55] : memref<7x3xf32, #tpu.memory_space<smem>>
    %113 = vector.broadcast %112 : f32 to vector<1x256xf32>
    %114 = arith.mulf %113, %77 : vector<1x256xf32>
    %115 = arith.addf %111, %114 : vector<1x256xf32>
    %c1_56 = arith.constant 1 : index
    %c1_57 = arith.constant 1 : index
    %116 = memref.load %arg6[%c1_56, %c1_57] : memref<7x3xf32, #tpu.memory_space<smem>>
    %117 = vector.broadcast %116 : f32 to vector<1x256xf32>
    %118 = arith.mulf %117, %78 : vector<1x256xf32>
    %119 = arith.addf %115, %118 : vector<1x256xf32>
    %c2_58 = arith.constant 2 : index
    %c1_59 = arith.constant 1 : index
    %120 = memref.load %arg6[%c2_58, %c1_59] : memref<7x3xf32, #tpu.memory_space<smem>>
    %121 = vector.broadcast %120 : f32 to vector<1x256xf32>
    %122 = arith.mulf %121, %79 : vector<1x256xf32>
    %123 = arith.addf %119, %122 : vector<1x256xf32>
    %c3_60 = arith.constant 3 : index
    %c1_61 = arith.constant 1 : index
    %124 = memref.load %arg6[%c3_60, %c1_61] : memref<7x3xf32, #tpu.memory_space<smem>>
    %125 = vector.broadcast %124 : f32 to vector<1x256xf32>
    %126 = arith.mulf %125, %34 : vector<1x256xf32>
    %127 = arith.addf %123, %126 : vector<1x256xf32>
    %c4_62 = arith.constant 4 : index
    %c1_63 = arith.constant 1 : index
    %128 = memref.load %arg6[%c4_62, %c1_63] : memref<7x3xf32, #tpu.memory_space<smem>>
    %129 = vector.broadcast %128 : f32 to vector<1x256xf32>
    %130 = arith.mulf %129, %48 : vector<1x256xf32>
    %131 = arith.addf %127, %130 : vector<1x256xf32>
    %c5_64 = arith.constant 5 : index
    %c1_65 = arith.constant 1 : index
    %132 = memref.load %arg6[%c5_64, %c1_65] : memref<7x3xf32, #tpu.memory_space<smem>>
    %133 = vector.broadcast %132 : f32 to vector<1x256xf32>
    %134 = arith.mulf %133, %62 : vector<1x256xf32>
    %135 = arith.addf %131, %134 : vector<1x256xf32>
    %c6_66 = arith.constant 6 : index
    %c1_67 = arith.constant 1 : index
    %136 = memref.load %arg6[%c6_66, %c1_67] : memref<7x3xf32, #tpu.memory_space<smem>>
    %137 = vector.broadcast %136 : f32 to vector<1x256xf32>
    %138 = arith.mulf %137, %76 : vector<1x256xf32>
    %139 = arith.addf %135, %138 : vector<1x256xf32>
    %c2_68 = arith.constant 2 : index
    %140 = memref.load %arg7[%c2_68] : memref<3xf32, #tpu.memory_space<smem>>
    %141 = vector.broadcast %140 : f32 to vector<1x256xf32>
    %c0_69 = arith.constant 0 : index
    %c2_70 = arith.constant 2 : index
    %142 = memref.load %arg6[%c0_69, %c2_70] : memref<7x3xf32, #tpu.memory_space<smem>>
    %143 = vector.broadcast %142 : f32 to vector<1x256xf32>
    %144 = arith.mulf %143, %77 : vector<1x256xf32>
    %145 = arith.addf %141, %144 : vector<1x256xf32>
    %c1_71 = arith.constant 1 : index
    %c2_72 = arith.constant 2 : index
    %146 = memref.load %arg6[%c1_71, %c2_72] : memref<7x3xf32, #tpu.memory_space<smem>>
    %147 = vector.broadcast %146 : f32 to vector<1x256xf32>
    %148 = arith.mulf %147, %78 : vector<1x256xf32>
    %149 = arith.addf %145, %148 : vector<1x256xf32>
    %c2_73 = arith.constant 2 : index
    %c2_74 = arith.constant 2 : index
    %150 = memref.load %arg6[%c2_73, %c2_74] : memref<7x3xf32, #tpu.memory_space<smem>>
    %151 = vector.broadcast %150 : f32 to vector<1x256xf32>
    %152 = arith.mulf %151, %79 : vector<1x256xf32>
    %153 = arith.addf %149, %152 : vector<1x256xf32>
    %c3_75 = arith.constant 3 : index
    %c2_76 = arith.constant 2 : index
    %154 = memref.load %arg6[%c3_75, %c2_76] : memref<7x3xf32, #tpu.memory_space<smem>>
    %155 = vector.broadcast %154 : f32 to vector<1x256xf32>
    %156 = arith.mulf %155, %34 : vector<1x256xf32>
    %157 = arith.addf %153, %156 : vector<1x256xf32>
    %c4_77 = arith.constant 4 : index
    %c2_78 = arith.constant 2 : index
    %158 = memref.load %arg6[%c4_77, %c2_78] : memref<7x3xf32, #tpu.memory_space<smem>>
    %159 = vector.broadcast %158 : f32 to vector<1x256xf32>
    %160 = arith.mulf %159, %48 : vector<1x256xf32>
    %161 = arith.addf %157, %160 : vector<1x256xf32>
    %c5_79 = arith.constant 5 : index
    %c2_80 = arith.constant 2 : index
    %162 = memref.load %arg6[%c5_79, %c2_80] : memref<7x3xf32, #tpu.memory_space<smem>>
    %163 = vector.broadcast %162 : f32 to vector<1x256xf32>
    %164 = arith.mulf %163, %62 : vector<1x256xf32>
    %165 = arith.addf %161, %164 : vector<1x256xf32>
    %c6_81 = arith.constant 6 : index
    %c2_82 = arith.constant 2 : index
    %166 = memref.load %arg6[%c6_81, %c2_82] : memref<7x3xf32, #tpu.memory_space<smem>>
    %167 = vector.broadcast %166 : f32 to vector<1x256xf32>
    %168 = arith.mulf %167, %76 : vector<1x256xf32>
    %169 = arith.addf %165, %168 : vector<1x256xf32>
    %cst_83 = arith.constant 4.850000e-01 : f32
    %170 = vector.broadcast %cst_83 : f32 to vector<1x256xf32>
    %171 = arith.subf %109, %170 : vector<1x256xf32>
    %cst_84 = arith.constant 4.36681223 : f32
    %172 = vector.broadcast %cst_84 : f32 to vector<1x256xf32>
    %173 = arith.mulf %171, %172 : vector<1x256xf32>
    %cst_85 = arith.constant 4.560000e-01 : f32
    %174 = vector.broadcast %cst_85 : f32 to vector<1x256xf32>
    %175 = arith.subf %139, %174 : vector<1x256xf32>
    %cst_86 = arith.constant 4.46428585 : f32
    %176 = vector.broadcast %cst_86 : f32 to vector<1x256xf32>
    %177 = arith.mulf %175, %176 : vector<1x256xf32>
    %cst_87 = arith.constant 4.060000e-01 : f32
    %178 = vector.broadcast %cst_87 : f32 to vector<1x256xf32>
    %179 = arith.subf %169, %178 : vector<1x256xf32>
    %cst_88 = arith.constant 4.44444466 : f32
    %180 = vector.broadcast %cst_88 : f32 to vector<1x256xf32>
    %181 = arith.mulf %179, %180 : vector<1x256xf32>
    %c0_89 = arith.constant 0 : index
    %182 = memref.load %arg9[%c0_89] : memref<4xf32, #tpu.memory_space<smem>>
    %183 = vector.broadcast %182 : f32 to vector<1x256xf32>
    %c0_90 = arith.constant 0 : index
    %c0_91 = arith.constant 0 : index
    %184 = memref.load %arg8[%c0_90, %c0_91] : memref<3x4xf32, #tpu.memory_space<smem>>
    %185 = vector.broadcast %184 : f32 to vector<1x256xf32>
    %186 = arith.mulf %185, %173 : vector<1x256xf32>
    %187 = arith.addf %183, %186 : vector<1x256xf32>
    %c1_92 = arith.constant 1 : index
    %c0_93 = arith.constant 0 : index
    %188 = memref.load %arg8[%c1_92, %c0_93] : memref<3x4xf32, #tpu.memory_space<smem>>
    %189 = vector.broadcast %188 : f32 to vector<1x256xf32>
    %190 = arith.mulf %189, %177 : vector<1x256xf32>
    %191 = arith.addf %187, %190 : vector<1x256xf32>
    %c2_94 = arith.constant 2 : index
    %c0_95 = arith.constant 0 : index
    %192 = memref.load %arg8[%c2_94, %c0_95] : memref<3x4xf32, #tpu.memory_space<smem>>
    %193 = vector.broadcast %192 : f32 to vector<1x256xf32>
    %194 = arith.mulf %193, %181 : vector<1x256xf32>
    %195 = arith.addf %191, %194 : vector<1x256xf32>
    %c1_96 = arith.constant 1 : index
    %196 = memref.load %arg9[%c1_96] : memref<4xf32, #tpu.memory_space<smem>>
    %197 = vector.broadcast %196 : f32 to vector<1x256xf32>
    %c0_97 = arith.constant 0 : index
    %c1_98 = arith.constant 1 : index
    %198 = memref.load %arg8[%c0_97, %c1_98] : memref<3x4xf32, #tpu.memory_space<smem>>
    %199 = vector.broadcast %198 : f32 to vector<1x256xf32>
    %200 = arith.mulf %199, %173 : vector<1x256xf32>
    %201 = arith.addf %197, %200 : vector<1x256xf32>
    %c1_99 = arith.constant 1 : index
    %c1_100 = arith.constant 1 : index
    %202 = memref.load %arg8[%c1_99, %c1_100] : memref<3x4xf32, #tpu.memory_space<smem>>
    %203 = vector.broadcast %202 : f32 to vector<1x256xf32>
    %204 = arith.mulf %203, %177 : vector<1x256xf32>
    %205 = arith.addf %201, %204 : vector<1x256xf32>
    %c2_101 = arith.constant 2 : index
    %c1_102 = arith.constant 1 : index
    %206 = memref.load %arg8[%c2_101, %c1_102] : memref<3x4xf32, #tpu.memory_space<smem>>
    %207 = vector.broadcast %206 : f32 to vector<1x256xf32>
    %208 = arith.mulf %207, %181 : vector<1x256xf32>
    %209 = arith.addf %205, %208 : vector<1x256xf32>
    %c2_103 = arith.constant 2 : index
    %210 = memref.load %arg9[%c2_103] : memref<4xf32, #tpu.memory_space<smem>>
    %211 = vector.broadcast %210 : f32 to vector<1x256xf32>
    %c0_104 = arith.constant 0 : index
    %c2_105 = arith.constant 2 : index
    %212 = memref.load %arg8[%c0_104, %c2_105] : memref<3x4xf32, #tpu.memory_space<smem>>
    %213 = vector.broadcast %212 : f32 to vector<1x256xf32>
    %214 = arith.mulf %213, %173 : vector<1x256xf32>
    %215 = arith.addf %211, %214 : vector<1x256xf32>
    %c1_106 = arith.constant 1 : index
    %c2_107 = arith.constant 2 : index
    %216 = memref.load %arg8[%c1_106, %c2_107] : memref<3x4xf32, #tpu.memory_space<smem>>
    %217 = vector.broadcast %216 : f32 to vector<1x256xf32>
    %218 = arith.mulf %217, %177 : vector<1x256xf32>
    %219 = arith.addf %215, %218 : vector<1x256xf32>
    %c2_108 = arith.constant 2 : index
    %c2_109 = arith.constant 2 : index
    %220 = memref.load %arg8[%c2_108, %c2_109] : memref<3x4xf32, #tpu.memory_space<smem>>
    %221 = vector.broadcast %220 : f32 to vector<1x256xf32>
    %222 = arith.mulf %221, %181 : vector<1x256xf32>
    %223 = arith.addf %219, %222 : vector<1x256xf32>
    %c3_110 = arith.constant 3 : index
    %224 = memref.load %arg9[%c3_110] : memref<4xf32, #tpu.memory_space<smem>>
    %225 = vector.broadcast %224 : f32 to vector<1x256xf32>
    %c0_111 = arith.constant 0 : index
    %c3_112 = arith.constant 3 : index
    %226 = memref.load %arg8[%c0_111, %c3_112] : memref<3x4xf32, #tpu.memory_space<smem>>
    %227 = vector.broadcast %226 : f32 to vector<1x256xf32>
    %228 = arith.mulf %227, %173 : vector<1x256xf32>
    %229 = arith.addf %225, %228 : vector<1x256xf32>
    %c1_113 = arith.constant 1 : index
    %c3_114 = arith.constant 3 : index
    %230 = memref.load %arg8[%c1_113, %c3_114] : memref<3x4xf32, #tpu.memory_space<smem>>
    %231 = vector.broadcast %230 : f32 to vector<1x256xf32>
    %232 = arith.mulf %231, %177 : vector<1x256xf32>
    %233 = arith.addf %229, %232 : vector<1x256xf32>
    %c2_115 = arith.constant 2 : index
    %c3_116 = arith.constant 3 : index
    %234 = memref.load %arg8[%c2_115, %c3_116] : memref<3x4xf32, #tpu.memory_space<smem>>
    %235 = vector.broadcast %234 : f32 to vector<1x256xf32>
    %236 = arith.mulf %235, %181 : vector<1x256xf32>
    %237 = arith.addf %233, %236 : vector<1x256xf32>
    %c0_117 = arith.constant 0 : index
    %c0_118 = arith.constant 0 : index
    %c0_119 = arith.constant 0 : index
    %238 = vector.load %arg10[%c0_117, %c0_118, %c0_119] : memref<1x4x256xf32, #tpu.memory_space<vmem>>, vector<1x1x256xf32>
    %239 = vector.shape_cast %238 : vector<1x1x256xf32> to vector<1x256xf32>
    %240 = vector.shape_cast %195 : vector<1x256xf32> to vector<1x1x256xf32>
    tpu.vector_store %arg10[%c0_117, %c0_118, %c0_119], %240 {strides = array<i32>} : memref<1x4x256xf32, #tpu.memory_space<vmem>>, vector<1x1x256xf32>,
    %c0_120 = arith.constant 0 : index
    %c1_121 = arith.constant 1 : index
    %c0_122 = arith.constant 0 : index
    %241 = vector.load %arg10[%c0_120, %c1_121, %c0_122] : memref<1x4x256xf32, #tpu.memory_space<vmem>>, vector<1x1x256xf32>
    %242 = vector.shape_cast %241 : vector<1x1x256xf32> to vector<1x256xf32>
    %243 = vector.shape_cast %209 : vector<1x256xf32> to vector<1x1x256xf32>
    tpu.vector_store %arg10[%c0_120, %c1_121, %c0_122], %243 {strides = array<i32>} : memref<1x4x256xf32, #tpu.memory_space<vmem>>, vector<1x1x256xf32>,
    %c0_123 = arith.constant 0 : index
    %c2_124 = arith.constant 2 : index
    %c0_125 = arith.constant 0 : index
    %244 = vector.load %arg10[%c0_123, %c2_124, %c0_125] : memref<1x4x256xf32, #tpu.memory_space<vmem>>, vector<1x1x256xf32>
    %245 = vector.shape_cast %244 : vector<1x1x256xf32> to vector<1x256xf32>
    %246 = vector.shape_cast %223 : vector<1x256xf32> to vector<1x1x256xf32>
    tpu.vector_store %arg10[%c0_123, %c2_124, %c0_125], %246 {strides = array<i32>} : memref<1x4x256xf32, #tpu.memory_space<vmem>>, vector<1x1x256xf32>,
    %c0_126 = arith.constant 0 : index
    %c3_127 = arith.constant 3 : index
    %c0_128 = arith.constant 0 : index
    %247 = vector.load %arg10[%c0_126, %c3_127, %c0_128] : memref<1x4x256xf32, #tpu.memory_space<vmem>>, vector<1x1x256xf32>
    %248 = vector.shape_cast %247 : vector<1x1x256xf32> to vector<1x256xf32>
    %249 = vector.shape_cast %237 : vector<1x256xf32> to vector<1x1x256xf32>
    tpu.vector_store %arg10[%c0_126, %c3_127, %c0_128], %249 {strides = array<i32>} : memref<1x4x256xf32, #tpu.memory_space<vmem>>, vector<1x1x256xf32>,
    %c0_129 = arith.constant 0 : index
    %c0_130 = arith.constant 0 : index
    %c0_131 = arith.constant 0 : index
    %250 = vector.load %arg3[%c0_129, %c0_130, %c0_131] : memref<1x1x256xi32, #tpu.memory_space<vmem>>, vector<1x1x256xi32>
    %251 = vector.shape_cast %250 : vector<1x1x256xi32> to vector<1x256xi32>
    %252 = arith.maximumf %195, %209 : vector<1x256xf32>
    %253 = arith.maximumf %252, %223 : vector<1x256xf32>
    %254 = arith.maximumf %253, %237 : vector<1x256xf32>
    %cst_132 = arith.constant 0.000000e+00 : f32
    %255 = vector.broadcast %cst_132 : f32 to vector<1x256xf32>
    %cst_133 = arith.constant 0.000000e+00 : f32
    %256 = vector.broadcast %cst_133 : f32 to vector<1x256xf32>
    %257 = arith.subf %195, %254 : vector<1x256xf32>
    %258 = math.exp %257 : vector<1x256xf32>
    %259 = arith.addf %255, %258 : vector<1x256xf32>
    %c0_i32 = arith.constant 0 : i32
    %260 = vector.broadcast %c0_i32 : i32 to vector<1x256xi32>
    %261 = arith.cmpi eq, %251, %260 : vector<1x256xi32>
    %cst_134 = arith.constant 0.000000e+00 : f32
    %262 = vector.broadcast %cst_134 : f32 to vector<1x256xf32>
    %263 = arith.select %261, %195, %262 : vector<1x256xi1>, vector<1x256xf32>
    %264 = arith.addf %256, %263 : vector<1x256xf32>
    %265 = arith.subf %209, %254 : vector<1x256xf32>
    %266 = math.exp %265 : vector<1x256xf32>
    %267 = arith.addf %259, %266 : vector<1x256xf32>
    %c1_i32 = arith.constant 1 : i32
    %268 = vector.broadcast %c1_i32 : i32 to vector<1x256xi32>
    %269 = arith.cmpi eq, %251, %268 : vector<1x256xi32>
    %cst_135 = arith.constant 0.000000e+00 : f32
    %270 = vector.broadcast %cst_135 : f32 to vector<1x256xf32>
    %271 = arith.select %269, %209, %270 : vector<1x256xi1>, vector<1x256xf32>
    %272 = arith.addf %264, %271 : vector<1x256xf32>
    %273 = arith.subf %223, %254 : vector<1x256xf32>
    %274 = math.exp %273 : vector<1x256xf32>
    %275 = arith.addf %267, %274 : vector<1x256xf32>
    %c2_i32 = arith.constant 2 : i32
    %276 = vector.broadcast %c2_i32 : i32 to vector<1x256xi32>
    %277 = arith.cmpi eq, %251, %276 : vector<1x256xi32>
    %cst_136 = arith.constant 0.000000e+00 : f32
    %278 = vector.broadcast %cst_136 : f32 to vector<1x256xf32>
    %279 = arith.select %277, %223, %278 : vector<1x256xi1>, vector<1x256xf32>
    %280 = arith.addf %272, %279 : vector<1x256xf32>
    %281 = arith.subf %237, %254 : vector<1x256xf32>
    %282 = math.exp %281 : vector<1x256xf32>
    %283 = arith.addf %275, %282 : vector<1x256xf32>
    %c3_i32 = arith.constant 3 : i32
    %284 = vector.broadcast %c3_i32 : i32 to vector<1x256xi32>
    %285 = arith.cmpi eq, %251, %284 : vector<1x256xi32>
    %cst_137 = arith.constant 0.000000e+00 : f32
    %286 = vector.broadcast %cst_137 : f32 to vector<1x256xf32>
    %287 = arith.select %285, %237, %286 : vector<1x256xi1>, vector<1x256xf32>
    %288 = arith.addf %280, %287 : vector<1x256xf32>
    %289 = math.log %283 : vector<1x256xf32>
    %290 = arith.addf %254, %289 : vector<1x256xf32>
    %c-1_i32 = arith.constant -1 : i32
    %291 = vector.broadcast %c-1_i32 : i32 to vector<1x256xi32>
    %292 = arith.cmpi ne, %251, %291 : vector<1x256xi32>
    %293 = arith.extui %292 : vector<1x256xi1> to vector<1x256xi32>
    %294 = arith.sitofp %293 : vector<1x256xi32> to vector<1x256xf32>
    %295 = arith.subf %290, %288 : vector<1x256xf32>
    %296 = arith.mulf %295, %294 : vector<1x256xf32>
    %297 = vector.shape_cast %296 : vector<1x256xf32> to vector<1x1x256xf32>
    %cst_138 = arith.constant dense<0.000000e+00> : vector<1xf32>
    %298 = vector.multi_reduction <add>, %297, %cst_138 [1, 2] : vector<1x1x256xf32> to vector<1xf32>
    %299 = vector.shape_cast %298 : vector<1xf32> to vector<1x1x1xf32>
    %300 = vector.extract %299[0, 0, 0] : f32 from vector<1x1x1xf32>
    %301 = vector.shape_cast %294 : vector<1x256xf32> to vector<1x1x256xf32>
    %cst_139 = arith.constant dense<0.000000e+00> : vector<1xf32>
    %302 = vector.multi_reduction <add>, %301, %cst_139 [1, 2] : vector<1x1x256xf32> to vector<1xf32>
    %303 = vector.shape_cast %302 : vector<1xf32> to vector<1x1x1xf32>
    %304 = vector.extract %303[0, 0, 0] : f32 from vector<1x1x1xf32>
    %305 = tpu.iota {dimensions = array<i32: 0>} : vector<2x128xi32>
    %c0_i32_140 = arith.constant 0 : i32
    %306 = vector.broadcast %c0_i32_140 : i32 to vector<2x128xi32>
    %307 = arith.cmpi eq, %305, %306 : vector<2x128xi32>
    %308 = vector.broadcast %300 : f32 to vector<2x128xf32>
    %309 = vector.broadcast %304 : f32 to vector<2x128xf32>
    %310 = arith.select %307, %308, %309 : vector<2x128xi1>, vector<2x128xf32>
    %311 = vector.shape_cast %310 : vector<2x128xf32> to vector<1x1x2x128xf32>
    %c0_141 = arith.constant 0 : index
    %c0_142 = arith.constant 0 : index
    %c0_143 = arith.constant 0 : index
    %c0_144 = arith.constant 0 : index
    %312 = vector.load %arg11[%c0_141, %c0_142, %c0_143, %c0_144] : memref<1x1x2x128xf32, #tpu.memory_space<vmem>>, vector<1x1x2x128xf32>
    tpu.vector_store %arg11[%c0_141, %c0_142, %c0_143, %c0_144], %311 {strides = array<i32>} : memref<1x1x2x128xf32, #tpu.memory_space<vmem>>, vector<1x1x2x128xf32>,
    return
  }
  func.func @transform_0(%arg0: i32, %arg1: i32) -> (i32, i32, i32) {
    %c0_i32 = arith.constant 0 : i32
    %c0_i32_0 = arith.constant 0 : i32
    return %arg0, %c0_i32, %arg1 : i32, i32, i32
  }
  func.func @transform_1(%arg0: i32, %arg1: i32) -> (i32, i32, i32) {
    %c0_i32 = arith.constant 0 : i32
    %c0_i32_0 = arith.constant 0 : i32
    return %arg0, %c0_i32, %arg1 : i32, i32, i32
  }
  func.func @transform_2(%arg0: i32, %arg1: i32) -> (i32, i32) {
    %c0_i32 = arith.constant 0 : i32
    %c0_i32_0 = arith.constant 0 : i32
    %c0_i32_1 = arith.constant 0 : i32
    return %c0_i32, %c0_i32_0 : i32, i32
  }
  func.func @transform_3(%arg0: i32, %arg1: i32) -> i32 {
    %c0_i32 = arith.constant 0 : i32
    %c0_i32_0 = arith.constant 0 : i32
    return %c0_i32 : i32
  }
  func.func @transform_4(%arg0: i32, %arg1: i32) -> (i32, i32) {
    %c0_i32 = arith.constant 0 : i32
    %c0_i32_0 = arith.constant 0 : i32
    %c0_i32_1 = arith.constant 0 : i32
    return %c0_i32, %c0_i32_0 : i32, i32
  }
  func.func @transform_5(%arg0: i32, %arg1: i32) -> i32 {
    %c0_i32 = arith.constant 0 : i32
    %c0_i32_0 = arith.constant 0 : i32
    return %c0_i32 : i32
  }
  func.func @transform_6(%arg0: i32, %arg1: i32) -> (i32, i32) {
    %c0_i32 = arith.constant 0 : i32
    %c0_i32_0 = arith.constant 0 : i32
    %c0_i32_1 = arith.constant 0 : i32
    return %c0_i32, %c0_i32_0 : i32, i32
  }
  func.func @transform_7(%arg0: i32, %arg1: i32) -> i32 {
    %c0_i32 = arith.constant 0 : i32
    %c0_i32_0 = arith.constant 0 : i32
    return %c0_i32 : i32
  }
  func.func @transform_8(%arg0: i32, %arg1: i32) -> (i32, i32, i32) {
    %c0_i32 = arith.constant 0 : i32
    %c0_i32_0 = arith.constant 0 : i32
    return %arg0, %c0_i32, %arg1 : i32, i32, i32
  }
  func.func @transform_9(%arg0: i32, %arg1: i32) -> (i32, i32, i32, i32) {
    %c0_i32 = arith.constant 0 : i32
    %c0_i32_0 = arith.constant 0 : i32
    %c0_i32_1 = arith.constant 0 : i32
    return %arg0, %arg1, %c0_i32, %c0_i32_0 : i32, i32, i32, i32
  }
}

</mosaic_0001>

<llo_original>
// kernel: tpu_custom_call.1
$region0: #{tpu_custom_call.1}
  #allocation0 [shape = 'u32[]', space=smem, size = 0x4, offset = 0x4, fixed_abs, tag = 'smem constant byte address 0x4 - core index']
  #allocation1 [shape = 'u32[72,128]{1,0:T(1,128)}', space=vmem, size = 0x9000, scoped, tag = 'internal scratch']
  %s0 = inlined_call_operand.vmem [shape: f32[2,3,256], index: 0, kind: input, shape index: {}]
  %s1 = inlined_call_operand.vmem [shape: s32[2,1,256], index: 1, kind: input, shape index: {}]
  %s2 = inlined_call_operand.vmem [shape: f32[3,4], index: 2, kind: input, shape index: {}]
  %s3 = inlined_call_operand.vmem [shape: f32[4], index: 3, kind: input, shape index: {}]
  %s4 = inlined_call_operand.vmem [shape: f32[7,3], index: 4, kind: input, shape index: {}]
  %s5 = inlined_call_operand.vmem [shape: f32[3], index: 5, kind: input, shape index: {}]
  %s6 = inlined_call_operand.vmem [shape: f32[3,4], index: 6, kind: input, shape index: {}]
  %s7 = inlined_call_operand.vmem [shape: f32[4], index: 7, kind: input, shape index: {}]
  %s8 = inlined_call_operand.hbm [shape: f32[2,4,256], index: 8, kind: output, shape index: {0}]
  %s9 = inlined_call_operand.hbm [shape: f32[2,1,2,128], index: 9, kind: output, shape index: {1}]
  %10 = xla_tuple %s8, %s9
  %s11 = sld [smem:[#allocation0]]
  $region97: #{tpu_custom_call.1} parent=0
    _
  %s13 = ssub.s32 1, %s11
  %s14 = scalar_select 0, %s13, %s11
  $region1: #{tpu_custom_call.1} parent=0
    #allocation2 [shape = 'u8[2048]{0}', space=smem, size = 0x800, scoped, tag = 'input window, operand 2, single buffered']
    #allocation3 [shape = 's32[2]{0}', space=sflag, size = 0x8, scoped, tag = 'scoped memory for tpu_custom_call.1']
    #allocation4 [shape = 's32[2]{0}', space=sflag, size = 0x8, scoped, tag = 'scoped memory for tpu_custom_call.1']
    #allocation5 [shape = 'u8[512]{0}', space=smem, size = 0x200, scoped, tag = 'input window, operand 3, single buffered']
    #allocation6 [shape = 's32[1]{0}', space=sflag, size = 0x4, scoped, tag = 'scoped memory for tpu_custom_call.1']
    #allocation7 [shape = 'u8[4096]{0}', space=smem, size = 0x1000, scoped, tag = 'input window, operand 4, single buffered']
    #allocation8 [shape = 'u8[512]{0}', space=smem, size = 0x200, scoped, tag = 'input window, operand 5, single buffered']
    #allocation9 [shape = 's32[1]{0}', space=sflag, size = 0x4, scoped, tag = 'scoped memory for tpu_custom_call.1']
    #allocation10 [shape = 'u8[2048]{0}', space=smem, size = 0x800, scoped, tag = 'input window, operand 6, single buffered']
    #allocation11 [shape = 'u8[512]{0}', space=smem, size = 0x200, scoped, tag = 'input window, operand 7, single buffered']
    #allocation12 [shape = 's32[1]{0}', space=sflag, size = 0x4, scoped, tag = 'scoped memory for tpu_custom_call.1']
    #allocation13 [shape = 'u8[8192]{0}', space=vmem, size = 0x2000, scoped, tag = 'output window, operand 0']
    #allocation14 [shape = 'u8[2048]{0}', space=vmem, size = 0x800, scoped, tag = 'output window, operand 1']
    #allocation15 [shape = 's32[2]{0}', space=sflag, size = 0x8, scoped, tag = 'scoped memory for tpu_custom_call.1']
    %15 = vsyncpa [#allocation4], 0
    %16 = vsyncpa [#allocation6], 0
    %17 = vsyncpa [#allocation9], 0
    %18 = vsyncpa [#allocation12], 0
    %19 = vsyncpa [#allocation3], 0
    %s20 = scalar_lea.sflag [#allocation3], 1
    %21 = vsyncpa %s20, 0
    %22 = vsyncpa [#allocation15], 0
    %s23 = scalar_lea.sflag [#allocation15], 1
    %24 = vsyncpa %s23, 0
    loop: start=0, step=1, limit=4
    $region2: #{tpu_custom_call.1} parent=1 // loop_pre_header
      _
    $region3: #{tpu_custom_call.1} parent=1 // loop_header
      %s26 = sphi 0, %s30
      %p27 = scmp.ge.s32.totalorder %s26, 4
      %s33 = sphi 0, %s45
      %s34 = sphi 0, %s41
      %s35 = sphi 0, %s33
      %s36 = sphi 0, %s34
      %s37 = sphi 0, %s35
      %s38 = sphi 0, %s36
      %s50 = sphi 0, %s52
      %s53 = sphi 0, %s50
      %s54 = sphi 0, %s53
      %s70 = sphi 0, %s54
      %s78 = sphi 0, %s80
      %s81 = sphi 0, %s78
      %s82 = sphi 0, %s81
      %s98 = sphi 0, %s82
      %s102 = sphi 0, %s102
      %s104 = sphi 0, %s102
      %s105 = sphi 0, %s104
      %s119 = sphi 0, %s105
      %s123 = sphi 0, %s123
      %s125 = sphi 0, %s123
      %s126 = sphi 0, %s125
      %s140 = sphi 0, %s126
      %s144 = sphi 0, %s144
      %s146 = sphi 0, %s144
      %s147 = sphi 0, %s146
      %s161 = sphi 0, %s147
      %s165 = sphi 0, %s165
      %s167 = sphi 0, %s165
      %s168 = sphi 0, %s167
      %s182 = sphi 0, %s168
      %s186 = sphi 0, %s186
      %s188 = sphi 0, %s186
      %s189 = sphi 0, %s188
      %s203 = sphi 0, %s189
      %s207 = sphi 0, %s207
      %s209 = sphi 0, %s207
      %s210 = sphi 0, %s209
      %s224 = sphi 0, %s210
      %s232 = sphi 0, %s234
      %s235 = sphi 0, %s232
      %s236 = sphi 0, %s235
      %s252 = sphi 0, %s236
      %s260 = sphi 0, %s262
      %s263 = sphi 0, %s260
      %s264 = sphi 0, %s263
      %s280 = sphi 0, %s264
    $region4: #{tpu_custom_call.1} parent=1 // loop_header_branch
      %29 = sbr.rel (%p27) target = $region8
    $region5: #{tpu_custom_call.1} parent=1 // loop_body
      %s31 = ssub.s32 %s26, 1
      %s32 = ssub.s32 %s26, 2
      %s39 = sadd.s32 1, %s34
      %p40 = scmp.ge.s32.totalorder %s39, 1
      %s41 = scalar_select %p40, 0, %s39
      %s42 = sadd.s32 1, %s33
      %s43 = scalar_select %p40, %s42, %s33
      %p44 = scmp.ge.s32.totalorder %s43, 2
      %s45 = scalar_select %p44, 0, %s43
      %s46 = ssub.s32 %s33, %s45
      %s47 = ssub.s32 %s34, %s41
      %s48 = sor.u32 %s46, %s47
      %p49 = scmp.eq.s32.totalorder %s48, 0
      %s51 = sadd.s32 %s50, 1
      %s52 = scalar_select %p49, %s50, %s51
      %p55 = pneg %p49
      %p56 = scmp.eq.s32.totalorder %s26, 1
      %p57 = por %p55, %p56
      %p58 = scmp.ne.s32.totalorder %s50, %s53
      %p59 = scmp.eq.s32.totalorder %s26, 0
      %p60 = por %p58, %p59
      %p61 = scmp.ne.s32.totalorder %s50, %s53
      %p62 = scmp.eq.s32.totalorder %s31, 1
      %p63 = por %p61, %p62
      %p64 = scmp.ne.s32.totalorder %s53, %s54
      %p65 = scmp.eq.s32.totalorder %s31, 0
      %p66 = por %p64, %p65
      %p67 = scmp.ne.s32.totalorder %s53, %s54
      %p68 = scmp.eq.s32.totalorder %s32, 1
      %p69 = por %p67, %p68
      %p71 = scmp.ne.s32.totalorder %s54, %s70
      %p72 = scmp.eq.s32.totalorder %s32, 0
      %p73 = por %p71, %p72
      %s74 = ssub.s32 %s33, %s45
      %s75 = ssub.s32 %s34, %s41
      %s76 = sor.u32 %s74, %s75
      %p77 = scmp.eq.s32.totalorder %s76, 0
      %s79 = sadd.s32 %s78, 1
      %s80 = scalar_select %p77, %s78, %s79
      %p83 = pneg %p77
      %p84 = scmp.eq.s32.totalorder %s26, 1
      %p85 = por %p83, %p84
      %p86 = scmp.ne.s32.totalorder %s78, %s81
      %p87 = scmp.eq.s32.totalorder %s26, 0
      %p88 = por %p86, %p87
      %p89 = scmp.ne.s32.totalorder %s78, %s81
      %p90 = scmp.eq.s32.totalorder %s31, 1
      %p91 = por %p89, %p90
      %p92 = scmp.ne.s32.totalorder %s81, %s82
      %p93 = scmp.eq.s32.totalorder %s31, 0
      %p94 = por %p92, %p93
      %p95 = scmp.ne.s32.totalorder %s81, %s82
      %p96 = scmp.eq.s32.totalorder %s32, 1
      %p97 = por %p95, %p96
      %p99 = scmp.ne.s32.totalorder %s82, %s98
      %p100 = scmp.eq.s32.totalorder %s32, 0
      %p101 = por %p99, %p100
      %s103 = sadd.s32 %s102, 1
      %p106 = scmp.eq.s32.totalorder %s26, 1
      %p107 = scmp.ne.s32.totalorder %s102, %s104
      %p108 = scmp.eq.s32.totalorder %s26, 0
      %p109 = por %p107, %p108
      %p110 = scmp.ne.s32.totalorder %s102, %s104
      %p111 = scmp.eq.s32.totalorder %s31, 1
      %p112 = por %p110, %p111
      %p113 = scmp.ne.s32.totalorder %s104, %s105
      %p114 = scmp.eq.s32.totalorder %s31, 0
      %p115 = por %p113, %p114
      %p116 = scmp.ne.s32.totalorder %s104, %s105
      %p117 = scmp.eq.s32.totalorder %s32, 1
      %p118 = por %p116, %p117
      %p120 = scmp.ne.s32.totalorder %s105, %s119
      %p121 = scmp.eq.s32.totalorder %s32, 0
      %p122 = por %p120, %p121
      %s124 = sadd.s32 %s123, 1
      %p127 = scmp.eq.s32.totalorder %s26, 1
      %p128 = scmp.ne.s32.totalorder %s123, %s125
      %p129 = scmp.eq.s32.totalorder %s26, 0
      %p130 = por %p128, %p129
      %p131 = scmp.ne.s32.totalorder %s123, %s125
      %p132 = scmp.eq.s32.totalorder %s31, 1
      %p133 = por %p131, %p132
      %p134 = scmp.ne.s32.totalorder %s125, %s126
      %p135 = scmp.eq.s32.totalorder %s31, 0
      %p136 = por %p134, %p135
      %p137 = scmp.ne.s32.totalorder %s125, %s126
      %p138 = scmp.eq.s32.totalorder %s32, 1
      %p139 = por %p137, %p138
      %p141 = scmp.ne.s32.totalorder %s126, %s140
      %p142 = scmp.eq.s32.totalorder %s32, 0
      %p143 = por %p141, %p142
      %s145 = sadd.s32 %s144, 1
      %p148 = scmp.eq.s32.totalorder %s26, 1
      %p149 = scmp.ne.s32.totalorder %s144, %s146
      %p150 = scmp.eq.s32.totalorder %s26, 0
      %p151 = por %p149, %p150
      %p152 = scmp.ne.s32.totalorder %s144, %s146
      %p153 = scmp.eq.s32.totalorder %s31, 1
      %p154 = por %p152, %p153
      %p155 = scmp.ne.s32.totalorder %s146, %s147
      %p156 = scmp.eq.s32.totalorder %s31, 0
      %p157 = por %p155, %p156
      %p158 = scmp.ne.s32.totalorder %s146, %s147
      %p159 = scmp.eq.s32.totalorder %s32, 1
      %p160 = por %p158, %p159
      %p162 = scmp.ne.s32.totalorder %s147, %s161
      %p163 = scmp.eq.s32.totalorder %s32, 0
      %p164 = por %p162, %p163
      %s166 = sadd.s32 %s165, 1
      %p169 = scmp.eq.s32.totalorder %s26, 1
      %p170 = scmp.ne.s32.totalorder %s165, %s167
      %p171 = scmp.eq.s32.totalorder %s26, 0
      %p172 = por %p170, %p171
      %p173 = scmp.ne.s32.totalorder %s165, %s167
      %p174 = scmp.eq.s32.totalorder %s31, 1
      %p175 = por %p173, %p174
      %p176 = scmp.ne.s32.totalorder %s167, %s168
      %p177 = scmp.eq.s32.totalorder %s31, 0
      %p178 = por %p176, %p177
      %p179 = scmp.ne.s32.totalorder %s167, %s168
      %p180 = scmp.eq.s32.totalorder %s32, 1
      %p181 = por %p179, %p180
      %p183 = scmp.ne.s32.totalorder %s168, %s182
      %p184 = scmp.eq.s32.totalorder %s32, 0
      %p185 = por %p183, %p184
      %s187 = sadd.s32 %s186, 1
      %p190 = scmp.eq.s32.totalorder %s26, 1
      %p191 = scmp.ne.s32.totalorder %s186, %s188
      %p192 = scmp.eq.s32.totalorder %s26, 0
      %p193 = por %p191, %p192
      %p194 = scmp.ne.s32.totalorder %s186, %s188
      %p195 = scmp.eq.s32.totalorder %s31, 1
      %p196 = por %p194, %p195
      %p197 = scmp.ne.s32.totalorder %s188, %s189
      %p198 = scmp.eq.s32.totalorder %s31, 0
      %p199 = por %p197, %p198
      %p200 = scmp.ne.s32.totalorder %s188, %s189
      %p201 = scmp.eq.s32.totalorder %s32, 1
      %p202 = por %p200, %p201
      %p204 = scmp.ne.s32.totalorder %s189, %s203
      %p205 = scmp.eq.s32.totalorder %s32, 0
      %p206 = por %p204, %p205
      %s208 = sadd.s32 %s207, 1
      %p211 = scmp.eq.s32.totalorder %s26, 1
      %p212 = scmp.ne.s32.totalorder %s207, %s209
      %p213 = scmp.eq.s32.totalorder %s26, 0
      %p214 = por %p212, %p213
      %p215 = scmp.ne.s32.totalorder %s207, %s209
      %p216 = scmp.eq.s32.totalorder %s31, 1
      %p217 = por %p215, %p216
      %p218 = scmp.ne.s32.totalorder %s209, %s210
      %p219 = scmp.eq.s32.totalorder %s31, 0
      %p220 = por %p218, %p219
      %p221 = scmp.ne.s32.totalorder %s209, %s210
      %p222 = scmp.eq.s32.totalorder %s32, 1
      %p223 = por %p221, %p222
      %p225 = scmp.ne.s32.totalorder %s210, %s224
      %p226 = scmp.eq.s32.totalorder %s32, 0
      %p227 = por %p225, %p226
      %s228 = ssub.s32 %s33, %s45
      %s229 = ssub.s32 %s34, %s41
      %s230 = sor.u32 %s228, %s229
      %p231 = scmp.eq.s32.totalorder %s230, 0
      %s233 = sadd.s32 %s232, 1
      %s234 = scalar_select %p231, %s232, %s233
      %p237 = pneg %p231
      %p238 = scmp.eq.s32.totalorder %s26, 1
      %p239 = por %p237, %p238
      %p240 = scmp.ne.s32.totalorder %s232, %s235
      %p241 = scmp.eq.s32.totalorder %s26, 0
      %p242 = por %p240, %p241
      %p243 = scmp.ne.s32.totalorder %s232, %s235
      %p244 = scmp.eq.s32.totalorder %s31, 1
      %p245 = por %p243, %p244
      %p246 = scmp.ne.s32.totalorder %s235, %s236
      %p247 = scmp.eq.s32.totalorder %s31, 0
      %p248 = por %p246, %p247
      %p249 = scmp.ne.s32.totalorder %s235, %s236
      %p250 = scmp.eq.s32.totalorder %s32, 1
      %p251 = por %p249, %p250
      %p253 = scmp.ne.s32.totalorder %s236, %s252
      %p254 = scmp.eq.s32.totalorder %s32, 0
      %p255 = por %p253, %p254
      %s256 = ssub.s32 %s33, %s45
      %s257 = ssub.s32 %s34, %s41
      %s258 = sor.u32 %s256, %s257
      %p259 = scmp.eq.s32.totalorder %s258, 0
      %s261 = sadd.s32 %s260, 1
      %s262 = scalar_select %p259, %s260, %s261
      %p265 = pneg %p259
      %p266 = scmp.eq.s32.totalorder %s26, 1
      %p267 = por %p265, %p266
      %p268 = scmp.ne.s32.totalorder %s260, %s263
      %p269 = scmp.eq.s32.totalorder %s26, 0
      %p270 = por %p268, %p269
      %p271 = scmp.ne.s32.totalorder %s260, %s263
      %p272 = scmp.eq.s32.totalorder %s31, 1
      %p273 = por %p271, %p272
      %p274 = scmp.ne.s32.totalorder %s263, %s264
      %p275 = scmp.eq.s32.totalorder %s31, 0
      %p276 = por %p274, %p275
      %p277 = scmp.ne.s32.totalorder %s263, %s264
      %p278 = scmp.eq.s32.totalorder %s32, 1
      %p279 = por %p277, %p278
      %p281 = scmp.ne.s32.totalorder %s264, %s280
      %p282 = scmp.eq.s32.totalorder %s32, 0
      %p283 = por %p281, %p282
      %p284 = scmp.le.s32.totalorder 1, %s26
      %p285 = scmp.lt.s32.totalorder %s26, 3
      %p286 = pnand %p284, %p285
      %p287 = pneg %p286
      // Predicated region
      $region9: #{tpu_custom_call.1} parent=5 // pred_check
        _
      $region10: #{tpu_custom_call.1} parent=5 // pred_check_branch
        %289 = sbr.rel (%p286) target = $region12
      $region11: #{tpu_custom_call.1} parent=5 // pred_region
        %s290 = ssub.s32 %s26, 1
        // Predicated region
        $region13: #{tpu_custom_call.1} parent=11 // pred_check
          %p291 = pneg %p115
        $region14: #{tpu_custom_call.1} parent=11 // pred_check_branch
          %293 = sbr.rel (%p291) target = $region16
        $region15: #{tpu_custom_call.1} parent=11 // pred_region
          %295 = vsyncadd [#allocation4], 0
          %s297 = sshll.u32 %s2, 4
          %s298 = int_to_ptr.vmem [resolvable:$true] %s297
          %300 = dma.vmem_to_smem %s298, 64, [#allocation2], [#allocation4]
        $region16: #{tpu_custom_call.1} parent=11 // pred_fallthru
          _
        // Predicated region
        $region17: #{tpu_custom_call.1} parent=11 // pred_check
          %p301 = pneg %p136
        $region18: #{tpu_custom_call.1} parent=11 // pred_check_branch
          %303 = sbr.rel (%p301) target = $region20
        $region19: #{tpu_custom_call.1} parent=11 // pred_region
          %305 = vsyncadd [#allocation6], 0
          %s307 = sshll.u32 %s3, 4
          %s308 = int_to_ptr.vmem [resolvable:$true] %s307
          %310 = dma.vmem_to_smem %s308, 16, [#allocation5], [#allocation6]
        $region20: #{tpu_custom_call.1} parent=11 // pred_fallthru
          _
        // Predicated region
        $region21: #{tpu_custom_call.1} parent=11 // pred_check
          %p311 = pneg %p157
        $region22: #{tpu_custom_call.1} parent=11 // pred_check_branch
          %313 = sbr.rel (%p311) target = $region24
        $region23: #{tpu_custom_call.1} parent=11 // pred_region
          %315 = vsyncadd [#allocation6], 0
          %s317 = sshll.u32 %s4, 4
          %s318 = int_to_ptr.vmem [resolvable:$true] %s317
          %320 = dma.vmem_to_smem %s318, 128, [#allocation7], [#allocation6]
        $region24: #{tpu_custom_call.1} parent=11 // pred_fallthru
          _
        // Predicated region
        $region25: #{tpu_custom_call.1} parent=11 // pred_check
          %p321 = pneg %p178
        $region26: #{tpu_custom_call.1} parent=11 // pred_check_branch
          %323 = sbr.rel (%p321) target = $region28
        $region27: #{tpu_custom_call.1} parent=11 // pred_region
          %325 = vsyncadd [#allocation9], 0
          %s327 = sshll.u32 %s5, 4
          %s328 = int_to_ptr.vmem [resolvable:$true] %s327
          %330 = dma.vmem_to_smem %s328, 16, [#allocation8], [#allocation9]
        $region28: #{tpu_custom_call.1} parent=11 // pred_fallthru
          _
        // Predicated region
        $region29: #{tpu_custom_call.1} parent=11 // pred_check
          %p331 = pneg %p199
        $region30: #{tpu_custom_call.1} parent=11 // pred_check_branch
          %333 = sbr.rel (%p331) target = $region32
        $region31: #{tpu_custom_call.1} parent=11 // pred_region
          %335 = vsyncadd [#allocation9], 0
          %s337 = sshll.u32 %s6, 4
          %s338 = int_to_ptr.vmem [resolvable:$true] %s337
          %340 = dma.vmem_to_smem %s338, 64, [#allocation10], [#allocation9]
        $region32: #{tpu_custom_call.1} parent=11 // pred_fallthru
          _
        // Predicated region
        $region33: #{tpu_custom_call.1} parent=11 // pred_check
          %p341 = pneg %p220
        $region34: #{tpu_custom_call.1} parent=11 // pred_check_branch
          %343 = sbr.rel (%p341) target = $region36
        $region35: #{tpu_custom_call.1} parent=11 // pred_region
          %345 = vsyncadd [#allocation12], 0
          %s347 = sshll.u32 %s7, 4
          %s348 = int_to_ptr.vmem [resolvable:$true] %s347
          %350 = dma.vmem_to_smem %s348, 16, [#allocation11], [#allocation12]
        $region36: #{tpu_custom_call.1} parent=11 // pred_fallthru
          _
      $region12: #{tpu_custom_call.1} parent=5 // pred_fallthru
        _
      %p351 = scmp.lt.s32.totalorder %s26, 2
      // Predicated region
      $region37: #{tpu_custom_call.1} parent=5 // pred_check
        %p352 = pneg %p351
      $region38: #{tpu_custom_call.1} parent=5 // pred_check_branch
        %354 = sbr.rel (%p352) target = $region40
      $region39: #{tpu_custom_call.1} parent=5 // pred_region
        // Predicated region
        $region41: #{tpu_custom_call.1} parent=39 // pred_check
          %p355 = pneg %p60
        $region42: #{tpu_custom_call.1} parent=39 // pred_check_branch
          %357 = sbr.rel (%p355) target = $region44
        $region43: #{tpu_custom_call.1} parent=39 // pred_region
          %s358 = smul.u32 2, %s34
          %p359 = scmp.lt.s32.totalorder %s33, 1
          %s360 = scalar_select %p359, %s33, 1
          %p361 = scmp.lt.s32.totalorder %s358, 1
          %s362 = scalar_select %p361, %s358, 1
          %s363 = smul.addr %s360, 2
          %s364 = sadd.s32 %s362, %s363
          %s365 = smul.addr %s364, 4
          %s366 = scalar_lea.vmem %s0, %s365
          %s367 = smul.u32 2, %s34
        $region44: #{tpu_custom_call.1} parent=39 // pred_fallthru
          _
        // Predicated region
        $region45: #{tpu_custom_call.1} parent=39 // pred_check
          %p368 = pneg %p88
        $region46: #{tpu_custom_call.1} parent=39 // pred_check_branch
          %370 = sbr.rel (%p368) target = $region48
        $region47: #{tpu_custom_call.1} parent=39 // pred_region
          %s371 = smul.u32 2, %s34
          %p372 = scmp.lt.s32.totalorder %s33, 1
          %s373 = scalar_select %p372, %s33, 1
          %p374 = scmp.lt.s32.totalorder %s371, 1
          %s375 = scalar_select %p374, %s371, 1
          %s376 = smul.addr %s373, 2
          %s377 = sadd.s32 %s375, %s376
          %s378 = scalar_lea.vmem %s1, %s377
          %s379 = smul.u32 2, %s34
        $region48: #{tpu_custom_call.1} parent=39 // pred_fallthru
          _
      $region40: #{tpu_custom_call.1} parent=5 // pred_fallthru
        _
      %p380 = scmp.le.s32.totalorder 1, %s26
      %p381 = scmp.lt.s32.totalorder %s26, 3
      %p382 = pnand %p380, %p381
      %p383 = pneg %p382
      // Predicated region
      $region49: #{tpu_custom_call.1} parent=5 // pred_check
        _
      $region50: #{tpu_custom_call.1} parent=5 // pred_check_branch
        %385 = sbr.rel (%p382) target = $region52
      $region51: #{tpu_custom_call.1} parent=5 // pred_region
        %s386 = ssub.s32 %s26, 1
        // Predicated region
        $region53: #{tpu_custom_call.1} parent=51 // pred_check
          %p387 = pneg %p115
        $region54: #{tpu_custom_call.1} parent=51 // pred_check_branch
          %389 = sbr.rel (%p387) target = $region56
        $region55: #{tpu_custom_call.1} parent=51 // pred_region
          %391 = dma.done [#allocation4], 64
        $region56: #{tpu_custom_call.1} parent=51 // pred_fallthru
          _
        // Predicated region
        $region57: #{tpu_custom_call.1} parent=51 // pred_check
          %p392 = pneg %p136
        $region58: #{tpu_custom_call.1} parent=51 // pred_check_branch
          %394 = sbr.rel (%p392) target = $region60
        $region59: #{tpu_custom_call.1} parent=51 // pred_region
          %396 = dma.done [#allocation6], 16
        $region60: #{tpu_custom_call.1} parent=51 // pred_fallthru
          _
        // Predicated region
        $region61: #{tpu_custom_call.1} parent=51 // pred_check
          %p397 = pneg %p157
        $region62: #{tpu_custom_call.1} parent=51 // pred_check_branch
          %399 = sbr.rel (%p397) target = $region64
        $region63: #{tpu_custom_call.1} parent=51 // pred_region
          %401 = dma.done [#allocation6], 128
        $region64: #{tpu_custom_call.1} parent=51 // pred_fallthru
          _
        // Predicated region
        $region65: #{tpu_custom_call.1} parent=51 // pred_check
          %p402 = pneg %p178
        $region66: #{tpu_custom_call.1} parent=51 // pred_check_branch
          %404 = sbr.rel (%p402) target = $region68
        $region67: #{tpu_custom_call.1} parent=51 // pred_region
          %406 = dma.done [#allocation9], 16
        $region68: #{tpu_custom_call.1} parent=51 // pred_fallthru
          _
        // Predicated region
        $region69: #{tpu_custom_call.1} parent=51 // pred_check
          %p407 = pneg %p199
        $region70: #{tpu_custom_call.1} parent=51 // pred_check_branch
          %409 = sbr.rel (%p407) target = $region72
        $region71: #{tpu_custom_call.1} parent=51 // pred_region
          %411 = dma.done [#allocation9], 64
        $region72: #{tpu_custom_call.1} parent=51 // pred_fallthru
          _
        // Predicated region
        $region73: #{tpu_custom_call.1} parent=51 // pred_check
          %p412 = pneg %p220
        $region74: #{tpu_custom_call.1} parent=51 // pred_check_branch
          %414 = sbr.rel (%p412) target = $region76
        $region75: #{tpu_custom_call.1} parent=51 // pred_region
          %416 = dma.done [#allocation12], 16
        $region76: #{tpu_custom_call.1} parent=51 // pred_fallthru
          _
        %417 = sfence
        %s418 = smul.u32 2, %s36
        %p419 = scmp.lt.s32.totalorder %s35, 1
        %s420 = scalar_select %p419, %s35, 1
        %p421 = scmp.lt.s32.totalorder %s418, 1
        %s422 = scalar_select %p421, %s418, 1
        %s423 = smul.addr %s420, 2
        %s424 = sadd.s32 %s422, %s423
        %s425 = smul.addr %s424, 4
        %s426 = scalar_lea.vmem %s0, %s425
        %p427 = pneg %p66
        %p428 = pneg %p63
        %s429 = smul.u32 2, %s36
        %p430 = scmp.lt.s32.totalorder %s35, 1
        %s431 = scalar_select %p430, %s35, 1
        %p432 = scmp.lt.s32.totalorder %s429, 1
        %s433 = scalar_select %p432, %s429, 1
        %s434 = smul.addr %s431, 2
        %s435 = sadd.s32 %s433, %s434
        %s436 = scalar_lea.vmem %s1, %s435
        %p437 = pneg %p94
        %p438 = pneg %p91
        %p439 = pneg %p115
        %p440 = pneg %p112
        %p441 = pneg %p136
        %p442 = pneg %p133
        %p443 = pneg %p157
        %p444 = pneg %p154
        %p445 = pneg %p178
        %p446 = pneg %p175
        %p447 = pneg %p199
        %p448 = pneg %p196
        %p449 = pneg %p220
        %p450 = pneg %p217
        %p451 = pneg %p248
        %p452 = pneg %p245
        %s453 = sand.u32 %s235, 1
        %s454 = scalar_lea.sflag [#allocation3], %s453
        %s455 = sand.u32 %s235, 1
        %s456 = smul.addr %s455, 8
        %s457 = scalar_lea.vmem [#allocation13], %s456
        %p458 = pneg %p276
        %p459 = pneg %p273
        %s460 = sand.u32 %s263, 1
        %s461 = scalar_lea.sflag [#allocation15], %s460
        %s462 = sand.u32 %s263, 1
        %s463 = smul.addr %s462, 2
        %s464 = scalar_lea.vmem [#allocation14], %s463
        %s465 = smul.u32 2, %s36
        %p466 = scmp.lt.s32.totalorder %s35, 1
        %s467 = scalar_select %p466, %s35, 1
        %p468 = scmp.lt.s32.totalorder %s465, 1
        %s469 = scalar_select %p468, %s465, 1
        %s470 = smul.addr %s467, 2
        %s471 = sadd.s32 %s469, %s470
        %s472 = smul.addr %s471, 4
        %s473 = scalar_lea.vmem %s0, %s472
        %s474 = smul.u32 2, %s36
        %s475 = smul.u32 2, %s36
        %p476 = scmp.lt.s32.totalorder %s35, 1
        %s477 = scalar_select %p476, %s35, 1
        %p478 = scmp.lt.s32.totalorder %s475, 1
        %s479 = scalar_select %p478, %s475, 1
        %s480 = smul.addr %s477, 2
        %s481 = sadd.s32 %s479, %s480
        %s482 = scalar_lea.vmem %s1, %s481
        %s483 = smul.u32 2, %s36
        %s484 = smul.u32 2, %s36
        %v485 = vld [vmem:[%s473] ss:$4 sm:$0x3]
        %s486 = scalar_lea.vmem %s473, 1
        %v487 = vld [vmem:[%s486] ss:$4 sm:$0x3]
        %s488 = scalar_lea.vmem %s473, 2
        %v489 = vld [vmem:[%s488] ss:$4 sm:$0x3]
        %v490 = vmul.f32 %v485, 0.229
        %v491 = vadd.f32 %v490, 0.485
        %v492 = vmul.f32 %v487, 0.224
        %v493 = vadd.f32 %v492, 0.456
        %v494 = vmul.f32 %v489, 0.225
        %v495 = vadd.f32 %v494, 0.406
        %s496 = sld [smem:[#allocation5]]
        %v497 = vstv %s496
        %s498 = sld [smem:[#allocation2]]
        %v499 = vstv %s498
        %v500 = vmul.f32 %v499, %v485
        %v501 = vadd.f32 %v497, %v500
        %s502 = sld [smem:[#allocation2 + $0x80]]
        %v503 = vstv %s502
        %v504 = vmul.f32 %v503, %v487
        %v505 = vadd.f32 %v501, %v504
        %s506 = sld [smem:[#allocation2 + $0x100]]
        %v507 = vstv %s506
        %v508 = vmul.f32 %v507, %v489
        %v509 = vadd.f32 %v505, %v508
        %s510 = sld [smem:[#allocation5 + $0x1]]
        %v511 = vstv %s510
        %s512 = sld [smem:[#allocation2 + $0x1]]
        %v513 = vstv %s512
        %v514 = vmul.f32 %v513, %v485
        %v515 = vadd.f32 %v511, %v514
        %s516 = sld [smem:[#allocation2 + $0x81]]
        %v517 = vstv %s516
        %v518 = vmul.f32 %v517, %v487
        %v519 = vadd.f32 %v515, %v518
        %s520 = sld [smem:[#allocation2 + $0x101]]
        %v521 = vstv %s520
        %v522 = vmul.f32 %v521, %v489
        %v523 = vadd.f32 %v519, %v522
        %s524 = sld [smem:[#allocation5 + $0x2]]
        %v525 = vstv %s524
        %s526 = sld [smem:[#allocation2 + $0x2]]
        %v527 = vstv %s526
        %v528 = vmul.f32 %v527, %v485
        %v529 = vadd.f32 %v525, %v528
        %s530 = sld [smem:[#allocation2 + $0x82]]
        %v531 = vstv %s530
        %v532 = vmul.f32 %v531, %v487
        %v533 = vadd.f32 %v529, %v532
        %s534 = sld [smem:[#allocation2 + $0x102]]
        %v535 = vstv %s534
        %v536 = vmul.f32 %v535, %v489
        %v537 = vadd.f32 %v533, %v536
        %s538 = sld [smem:[#allocation5 + $0x3]]
        %v539 = vstv %s538
        %s540 = sld [smem:[#allocation2 + $0x3]]
        %v541 = vstv %s540
        %v542 = vmul.f32 %v541, %v485
        %v543 = vadd.f32 %v539, %v542
        %s544 = sld [smem:[#allocation2 + $0x83]]
        %v545 = vstv %s544
        %v546 = vmul.f32 %v545, %v487
        %v547 = vadd.f32 %v543, %v546
        %s548 = sld [smem:[#allocation2 + $0x103]]
        %v549 = vstv %s548
        %v550 = vmul.f32 %v549, %v489
        %v551 = vadd.f32 %v547, %v550
        %v552 = vadd.f32 %v491, 0.0
        %v553 = vadd.f32 %v493, 0.0
        %v554 = vadd.f32 %v495, 0.0
        %s555 = sld [smem:[#allocation8]]
        %v556 = vstv %s555
        %s557 = sld [smem:[#allocation7]]
        %v558 = vstv %s557
        %v559 = vmul.f32 %v558, %v552
        %v560 = vadd.f32 %v556, %v559
        %s561 = sld [smem:[#allocation7 + $0x80]]
        %v562 = vstv %s561
        %v563 = vmul.f32 %v562, %v553
        %v564 = vadd.f32 %v560, %v563
        %s565 = sld [smem:[#allocation7 + $0x100]]
        %v566 = vstv %s565
        %v567 = vmul.f32 %v566, %v554
        %v568 = vadd.f32 %v564, %v567
        %s569 = sld [smem:[#allocation7 + $0x180]]
        %v570 = vstv %s569
        %v571 = vmul.f32 %v570, %v509
        %v572 = vadd.f32 %v568, %v571
        %s573 = sld [smem:[#allocation7 + $0x200]]
        %v574 = vstv %s573
        %v575 = vmul.f32 %v574, %v523
        %v576 = vadd.f32 %v572, %v575
        %s577 = sld [smem:[#allocation7 + $0x280]]
        %v578 = vstv %s577
        %v579 = vmul.f32 %v578, %v537
        %v580 = vadd.f32 %v576, %v579
        %s581 = sld [smem:[#allocation7 + $0x300]]
        %v582 = vstv %s581
        %v583 = vmul.f32 %v582, %v551
        %v584 = vadd.f32 %v580, %v583
        %s585 = sld [smem:[#allocation8 + $0x1]]
        %v586 = vstv %s585
        %s587 = sld [smem:[#allocation7 + $0x1]]
        %v588 = vstv %s587
        %v589 = vmul.f32 %v588, %v552
        %v590 = vadd.f32 %v586, %v589
        %s591 = sld [smem:[#allocation7 + $0x81]]
        %v592 = vstv %s591
        %v593 = vmul.f32 %v592, %v553
        %v594 = vadd.f32 %v590, %v593
        %s595 = sld [smem:[#allocation7 + $0x101]]
        %v596 = vstv %s595
        %v597 = vmul.f32 %v596, %v554
        %v598 = vadd.f32 %v594, %v597
        %s599 = sld [smem:[#allocation7 + $0x181]]
        %v600 = vstv %s599
        %v601 = vmul.f32 %v600, %v509
        %v602 = vadd.f32 %v598, %v601
        %s603 = sld [smem:[#allocation7 + $0x201]]
        %v604 = vstv %s603
        %v605 = vmul.f32 %v604, %v523
        %v606 = vadd.f32 %v602, %v605
        %s607 = sld [smem:[#allocation7 + $0x281]]
        %v608 = vstv %s607
        %v609 = vmul.f32 %v608, %v537
        %v610 = vadd.f32 %v606, %v609
        %s611 = sld [smem:[#allocation7 + $0x301]]
        %v612 = vstv %s611
        %v613 = vmul.f32 %v612, %v551
        %v614 = vadd.f32 %v610, %v613
        %s615 = sld [smem:[#allocation8 + $0x2]]
        %v616 = vstv %s615
        %s617 = sld [smem:[#allocation7 + $0x2]]
        %v618 = vstv %s617
        %v619 = vmul.f32 %v618, %v552
        %v620 = vadd.f32 %v616, %v619
        %s621 = sld [smem:[#allocation7 + $0x82]]
        %v622 = vstv %s621
        %v623 = vmul.f32 %v622, %v553
        %v624 = vadd.f32 %v620, %v623
        %s625 = sld [smem:[#allocation7 + $0x102]]
        %v626 = vstv %s625
        %v627 = vmul.f32 %v626, %v554
        %v628 = vadd.f32 %v624, %v627
        %s629 = sld [smem:[#allocation7 + $0x182]]
        %v630 = vstv %s629
        %v631 = vmul.f32 %v630, %v509
        %v632 = vadd.f32 %v628, %v631
        %s633 = sld [smem:[#allocation7 + $0x202]]
        %v634 = vstv %s633
        %v635 = vmul.f32 %v634, %v523
        %v636 = vadd.f32 %v632, %v635
        %s637 = sld [smem:[#allocation7 + $0x282]]
        %v638 = vstv %s637
        %v639 = vmul.f32 %v638, %v537
        %v640 = vadd.f32 %v636, %v639
        %s641 = sld [smem:[#allocation7 + $0x302]]
        %v642 = vstv %s641
        %v643 = vmul.f32 %v642, %v551
        %v644 = vadd.f32 %v640, %v643
        %v645 = vsub.f32 %v584, 0.485
        %v646 = vmul.f32 %v645, 4.366812
        %v647 = vsub.f32 %v614, 0.456
        %v648 = vmul.f32 %v647, 4.464286
        %v649 = vsub.f32 %v644, 0.406
        %v650 = vmul.f32 %v649, 4.4444447
        %s651 = sld [smem:[#allocation11]]
        %v652 = vstv %s651
        %s653 = sld [smem:[#allocation10]]
        %v654 = vstv %s653
        %v655 = vmul.f32 %v654, %v646
        %v656 = vadd.f32 %v652, %v655
        %s657 = sld [smem:[#allocation10 + $0x80]]
        %v658 = vstv %s657
        %v659 = vmul.f32 %v658, %v648
        %v660 = vadd.f32 %v656, %v659
        %s661 = sld [smem:[#allocation10 + $0x100]]
        %v662 = vstv %s661
        %v663 = vmul.f32 %v662, %v650
        %v664 = vadd.f32 %v660, %v663
        %s665 = sld [smem:[#allocation11 + $0x1]]
        %v666 = vstv %s665
        %s667 = sld [smem:[#allocation10 + $0x1]]
        %v668 = vstv %s667
        %v669 = vmul.f32 %v668, %v646
        %v670 = vadd.f32 %v666, %v669
        %s671 = sld [smem:[#allocation10 + $0x81]]
        %v672 = vstv %s671
        %v673 = vmul.f32 %v672, %v648
        %v674 = vadd.f32 %v670, %v673
        %s675 = sld [smem:[#allocation10 + $0x101]]
        %v676 = vstv %s675
        %v677 = vmul.f32 %v676, %v650
        %v678 = vadd.f32 %v674, %v677
        %s679 = sld [smem:[#allocation11 + $0x2]]
        %v680 = vstv %s679
        %s681 = sld [smem:[#allocation10 + $0x2]]
        %v682 = vstv %s681
        %v683 = vmul.f32 %v682, %v646
        %v684 = vadd.f32 %v680, %v683
        %s685 = sld [smem:[#allocation10 + $0x82]]
        %v686 = vstv %s685
        %v687 = vmul.f32 %v686, %v648
        %v688 = vadd.f32 %v684, %v687
        %s689 = sld [smem:[#allocation10 + $0x102]]
        %v690 = vstv %s689
        %v691 = vmul.f32 %v690, %v650
        %v692 = vadd.f32 %v688, %v691
        %s693 = sld [smem:[#allocation11 + $0x3]]
        %v694 = vstv %s693
        %s695 = sld [smem:[#allocation10 + $0x3]]
        %v696 = vstv %s695
        %v697 = vmul.f32 %v696, %v646
        %v698 = vadd.f32 %v694, %v697
        %s699 = sld [smem:[#allocation10 + $0x83]]
        %v700 = vstv %s699
        %v701 = vmul.f32 %v700, %v648
        %v702 = vadd.f32 %v698, %v701
        %s703 = sld [smem:[#allocation10 + $0x103]]
        %v704 = vstv %s703
        %v705 = vmul.f32 %v704, %v650
        %v706 = vadd.f32 %v702, %v705
        %v707 = vlaneseq
        %vm708 = vcmp.ge.s32.totalorder %v707, 0
        %vm709 = vcmp.lt.s32.totalorder %v707, 256
        %vm710 = vmand %vm708, %vm709
        %711 = vst.msk [vmem:[%s457] ss:$4 sm:$0x3] %vm710, %v664
        %s712 = scalar_lea.vmem %s457, 1 [#allocation13]
        %713 = vst.msk [vmem:[%s712] ss:$4 sm:$0x3] %vm710, %v678
        %s714 = scalar_lea.vmem %s457, 2 [#allocation13]
        %715 = vst.msk [vmem:[%s714] ss:$4 sm:$0x3] %vm710, %v692
        %s716 = scalar_lea.vmem %s457, 3 [#allocation13]
        %717 = vst.msk [vmem:[%s716] ss:$4 sm:$0x3] %vm710, %v706
        %v718 = vld [vmem:[%s482] sm:$0x3]
        %v719 = vmax.f32 %v664, %v678
        %v720 = vmax.f32 %v719, %v692
        %v721 = vmax.f32 %v720, %v706
        %v722 = vsub.f32 %v664, %v721
        %v723 = vmul.f32 %v722, 1.442695
        %v724 = vpow.pop %v723
        %v725 = vadd.f32 %v724, 0.0
        %vm726 = vcmp.eq.s32.totalorder %v718, 0
        %v727 = vsel %vm726, %v664, 0.0
        %v728 = vadd.f32 %v727, 0.0
        %v729 = vsub.f32 %v678, %v721
        %v730 = vmul.f32 %v729, 1.442695
        %v731 = vpow.pop %v730
        %v732 = vadd.f32 %v725, %v731
        %vm733 = vcmp.eq.s32.totalorder %v718, 1
        %v734 = vsel %vm733, %v678, 0.0
        %v735 = vadd.f32 %v728, %v734
        %v736 = vsub.f32 %v692, %v721
        %v737 = vmul.f32 %v736, 1.442695
        %v738 = vpow.pop %v737
        %v739 = vadd.f32 %v732, %v738
        %vm740 = vcmp.eq.s32.totalorder %v718, 2
        %v741 = vsel %vm740, %v692, 0.0
        %v742 = vadd.f32 %v735, %v741
        %v743 = vsub.f32 %v706, %v721
        %v744 = vmul.f32 %v743, 1.442695
        %v745 = vpow.pop %v744
        %v746 = vadd.f32 %v739, %v745
        %vm747 = vcmp.eq.s32.totalorder %v718, 3
        %v748 = vsel %vm747, %v706, 0.0
        %v749 = vadd.f32 %v742, %v748
        %v750 = vlog2.pop %v746
        %v751 = vmul.f32 %v750, 0.6931472
        %v752 = vadd.f32 %v721, %v751
        %vm753 = vcmp.ne.s32.totalorder %v718, 4294967295
        %v754 = vsel %vm753, 1, 0
        %v755 = vcvt.s32.f32 %v754
        %v756 = vsub.f32 %v752, %v749
        %v757 = vmul.f32 %v756, %v755
        %v759 = vperm.slane %v757, 0
        %v760 = vperm.slane %v757, 1
        %vm763 = vcmask 1040384
        %v764 = vsel %vm763, %v759, 0.0
        %v765 = vsel %vm763, %v760, 0.0
        %v766 = vadd.f32 %v764, %v765
        %767 = vadd.xlane.f32.xlu0 %v766
        %v768 = vpop.xlane.xlu0 %767
        %v769 = vrot.slane %v768, 4
        %v770 = vadd.f32 %v768, %v769
        %v771 = vrot.slane %v770, 2
        %v772 = vadd.f32 %v770, %v771
        %v773 = vrot.slane %v772, 1
        %v774 = vadd.f32 %v772, %v773
        %s775 = vtos %v774
        %v777 = vperm.slane %v755, 0
        %v778 = vperm.slane %v755, 1
        %v781 = vsel %vm763, %v777, 0.0
        %v782 = vsel %vm763, %v778, 0.0
        %v783 = vadd.f32 %v781, %v782
        %784 = vadd.xlane.f32.xlu0 %v783
        %v785 = vpop.xlane.xlu0 %784
        %v786 = vrot.slane %v785, 4
        %v787 = vadd.f32 %v785, %v786
        %v788 = vrot.slane %v787, 2
        %v789 = vadd.f32 %v787, %v788
        %v790 = vrot.slane %v789, 1
        %v791 = vadd.f32 %v789, %v790
        %s792 = vtos %v791
        %v793 = vlaneseq
        %v794 = vshrl.u32 %v793, 7
        %vm795 = vcmp.eq.s32.totalorder %v794, 0
        %v796 = vstv %s775
        %v797 = vstv %s792
        %v798 = vsel %vm795, %v796, %v797
        %799 = vst [vmem:[%s464] sm:$0x3] %v798
        %s800 = sand.u32 %s235, 1
        %s801 = scalar_lea.sflag [#allocation3], %s800
        %s802 = sand.u32 %s235, 1
        %s803 = smul.addr %s802, 8
        %s804 = scalar_lea.vmem [#allocation13], %s803
        %s805 = sand.u32 %s263, 1
        %s806 = scalar_lea.sflag [#allocation15], %s805
        %s807 = sand.u32 %s263, 1
        %s808 = smul.addr %s807, 2
        %s809 = scalar_lea.vmem [#allocation14], %s808
        // Predicated region
        $region77: #{tpu_custom_call.1} parent=51 // pred_check
          %p810 = pneg %p245
        $region78: #{tpu_custom_call.1} parent=51 // pred_check_branch
          %812 = sbr.rel (%p810) target = $region80
        $region79: #{tpu_custom_call.1} parent=51 // pred_region
          %s813 = smul.u32 2, %s36
          %815 = vsyncadd %s801, 0
          %s816 = smul.addr %s35, 2
          %s817 = sadd.s32 %s813, %s816
          %s818 = smul.addr %s817, 4
          %s819 = scalar_lea.hbm %s8, %s818
          %s821 = sshll.u32 %s804, 4
          %s822 = int_to_ptr.vmem [resolvable:$true] %s821
          %s823 = sshll.u32 %s819, 4
          %s824 = int_to_ptr.hbm [resolvable:$true] %s823
          %826 = dma.vmem_to_hbm [thread:$0]  %s822, 128, %s824, %s801
        $region80: #{tpu_custom_call.1} parent=51 // pred_fallthru
          _
        // Predicated region
        $region81: #{tpu_custom_call.1} parent=51 // pred_check
          %p827 = pneg %p273
        $region82: #{tpu_custom_call.1} parent=51 // pred_check_branch
          %829 = sbr.rel (%p827) target = $region84
        $region83: #{tpu_custom_call.1} parent=51 // pred_region
          %831 = vsyncadd %s806, 0
          %s832 = sadd.s32 %s36, %s35
          %s833 = smul.addr %s832, 2
          %s834 = scalar_lea.hbm %s9, %s833
          %s836 = sshll.u32 %s809, 4
          %s837 = int_to_ptr.vmem [resolvable:$true] %s836
          %s838 = sshll.u32 %s834, 4
          %s839 = int_to_ptr.hbm [resolvable:$true] %s838
          %841 = dma.vmem_to_hbm [thread:$0]  %s837, 32, %s839, %s806
        $region84: #{tpu_custom_call.1} parent=51 // pred_fallthru
          _
      $region52: #{tpu_custom_call.1} parent=5 // pred_fallthru
        _
      %p842 = scmp.le.s32.totalorder 2, %s26
      // Predicated region
      $region85: #{tpu_custom_call.1} parent=5 // pred_check
        %p843 = pneg %p842
      $region86: #{tpu_custom_call.1} parent=5 // pred_check_branch
        %845 = sbr.rel (%p843) target = $region88
      $region87: #{tpu_custom_call.1} parent=5 // pred_region
        %s846 = ssub.s32 %s26, 2
        // Predicated region
        $region89: #{tpu_custom_call.1} parent=87 // pred_check
          %p847 = pneg %p251
        $region90: #{tpu_custom_call.1} parent=87 // pred_check_branch
          %849 = sbr.rel (%p847) target = $region92
        $region91: #{tpu_custom_call.1} parent=87 // pred_region
          %s850 = sand.u32 %s236, 1
          %s851 = scalar_lea.sflag [#allocation3], %s850
          %s852 = sand.u32 %s236, 1
          %s853 = smul.addr %s852, 8
          %s854 = scalar_lea.vmem [#allocation13], %s853
          %856 = dma.done %s851, 128
        $region92: #{tpu_custom_call.1} parent=87 // pred_fallthru
          _
        // Predicated region
        $region93: #{tpu_custom_call.1} parent=87 // pred_check
          %p857 = pneg %p279
        $region94: #{tpu_custom_call.1} parent=87 // pred_check_branch
          %859 = sbr.rel (%p857) target = $region96
        $region95: #{tpu_custom_call.1} parent=87 // pred_region
          %s860 = sand.u32 %s264, 1
          %s861 = scalar_lea.sflag [#allocation15], %s860
          %s862 = sand.u32 %s264, 1
          %s863 = smul.addr %s862, 2
          %s864 = scalar_lea.vmem [#allocation14], %s863
          %866 = dma.done %s861, 32
        $region96: #{tpu_custom_call.1} parent=87 // pred_fallthru
          _
      $region88: #{tpu_custom_call.1} parent=5 // pred_fallthru
        _
    $region6: #{tpu_custom_call.1} parent=1 // loop_footer
      %s30 = sadd.s32 1, %s26
    $region7: #{tpu_custom_call.1} parent=1 // loop_footer_branch
      %25 = sbr.rel target = $region3
    $region8: #{tpu_custom_call.1} parent=1 // loop_exit
      _
    %867 = vsyncpa [#allocation3], 1
    %s868 = scalar_lea.sflag [#allocation3], 1
    %869 = vsyncpa %s868, 1
    %870 = vsyncpa [#allocation15], 1
    %s871 = scalar_lea.sflag [#allocation15], 1
    %872 = vsyncpa %s871, 1
    %873 = vsyncpa [#allocation4], 1
    %s874 = scalar_lea.sflag [#allocation4], 1
    %875 = vsyncpa %s874, 1
    %876 = vsyncpa [#allocation6], 1
    %877 = vsyncpa [#allocation9], 1
    %878 = vsyncpa [#allocation12], 1

</llo_original>
